<compile_context>
chip_gen: v6e
topology: v6e:2x2x1
jax: 0.10.0
libtpu: 0.0.40
codegen_flags: <defaults>
</compile_context>

<pallas_src>
import jax
import jax.numpy as jnp
import numpy as np
from jax.experimental import pallas as pl
from jax.experimental.pallas import tpu as pltpu


def make_lstm_encoder_kernel(num_layers, seq_len, batch, hidden_size):
    """Kernel ref order:
       x_flat, (w_ih, w_hh, b) * num_layers, fc_w, fc_b, out
    Shapes:
       x_flat [T*B, D0] bf16 (time-major, flattened)
       w_ih   [D_l, 4H] bf16, w_hh [H, 4H] bf16, b [1, 4H] f32  (gate order i,f,g,o;
              the g-block of the weights/bias is pre-scaled by 2 at pack time)
       fc_w   [H, O] bf16, fc_b [1, O] f32, out [B, O] f32
    """
    T, B, H = seq_len, batch, hidden_size

    def kernel(*refs):
        x_ref = refs[0]
        layer_refs = []
        idx = 1
        for _ in range(num_layers):
            layer_refs.append((refs[idx], refs[idx + 1], refs[idx + 2]))
            idx += 3
        fc_w_ref = refs[idx]
        fc_b_ref = refs[idx + 1]
        out_ref = refs[idx + 2]

        inp = x_ref[...]                                     # [T*B, D0] bf16
        h = jnp.zeros((B, H), jnp.float32)
        for l, (w_ih_ref, w_hh_ref, b_ref) in enumerate(layer_refs):
            w_ih = w_ih_ref[...]                             # [D_l, 4H] bf16
            w_hh = w_hh_ref[...]                             # [H, 4H]   bf16
            b = b_ref[...]                                   # [1, 4H]   f32

            # Whole-sequence fused input projection, off the serial chain.
            proj = jnp.dot(inp, w_ih,
                           preferred_element_type=jnp.float32) + b   # [T*B, 4H] f32

            h = jnp.zeros((B, H), jnp.float32)
            c = jnp.zeros((B, H), jnp.float32)
            last_layer = (l == num_layers - 1)
            outs = []
            for t in range(T):                               # static, fully unrolled
                gates = proj[t * B:(t + 1) * B, :] + jnp.dot(
                    h.astype(jnp.bfloat16), w_hh,
                    preferred_element_type=jnp.float32)       # [B, 4H] f32
                sig = jax.nn.sigmoid(gates)                   # single EUP pass
                i_g = sig[:, 0:H]
                f_g = sig[:, H:2 * H]
                g_g = 2.0 * sig[:, 2 * H:3 * H] - 1.0         # tanh via folded 2x scale
                o_g = sig[:, 3 * H:4 * H]
                c = f_g * c + i_g * g_g
                h = o_g * jnp.tanh(c)
                if not last_layer:
                    outs.append(h.astype(jnp.bfloat16))
            if not last_layer:
                inp = jnp.concatenate(outs, axis=0)           # [T*B, H] bf16, values only

        # encoded = fc(hn[-1])
        out_ref[...] = (jnp.dot(h.astype(jnp.bfloat16), fc_w_ref[...],
                                preferred_element_type=jnp.float32)
                        + fc_b_ref[...])

    return kernel


def pack_params(raw_params, hidden_size):
    """Repack raw PyTorch-layout params for the kernel:
       transpose to features-last, fold 2x into the g-gate block (so tanh can
       be derived from the single sigmoid pass), cast weights to bf16."""
    H = hidden_size
    lstm_raw, (fc_w, fc_b) = raw_params
    packed = []
    for (w_ih, w_hh, b_ih, b_hh) in lstm_raw:
        w_ih_t = w_ih.T                       # [D, 4H]
        w_hh_t = w_hh.T                       # [H, 4H]
        bias = (b_ih + b_hh).reshape(1, 4 * H)
        g_scale = jnp.ones((1, 4 * H), jnp.float32).at[:, 2 * H:3 * H].set(2.0)
        w_ih_t = (w_ih_t * g_scale).astype(jnp.bfloat16)
        w_hh_t = (w_hh_t * g_scale).astype(jnp.bfloat16)
        bias = bias * g_scale                 # stays f32
        packed.append((w_ih_t, w_hh_t, bias))
    fc_w_p = fc_w.T.astype(jnp.bfloat16)                       # [H, O]
    fc_b_p = fc_b.reshape(1, -1).astype(jnp.float32)           # [1, O]
    return packed, (fc_w_p, fc_b_p)


def lstm_encoder_forward(action, raw_params, hidden_size, num_layers, cond_input=None):
    """Mirrors LSTMEncoder.forward. action: [B, T, D_action] (batch_first)."""
    if cond_input is not None:
        x = jnp.concatenate((cond_input, action), axis=-1)     # glue, plain JAX
    else:
        x = action
    B, T, D = x.shape
    # time-major, flattened, bf16 (only feeds matmuls)
    x_flat = jnp.transpose(x, (1, 0, 2)).reshape(T * B, D).astype(jnp.bfloat16)

    lstm_params, (fc_w, fc_b) = pack_params(raw_params, hidden_size)
    inputs = [x_flat]
    for (w_ih, w_hh, b) in lstm_params:
        inputs += [w_ih, w_hh, b]
    inputs += [fc_w, fc_b]
    output_size = fc_w.shape[1]

    out = pl.pallas_call(
        make_lstm_encoder_kernel(num_layers, T, B, hidden_size),
        out_shape=jax.ShapeDtypeStruct((B, output_size), jnp.float32),
        in_specs=[pl.BlockSpec(memory_space=pltpu.MemorySpace.VMEM)] * len(inputs),
        out_specs=pl.BlockSpec(memory_space=pltpu.MemorySpace.VMEM),
    )(*inputs)
    return out


def init_params(key, input_size, hidden_size, output_size, num_layers):
    """Deterministic init matching PyTorch LSTM/Linear parameter shapes
    (uniform(-1/sqrt(H), 1/sqrt(H))).  Raw (PyTorch layout, f32) params; the
    kernel-facing repacking (transpose / g-fold / bf16) happens in pack_params."""
    k = 1.0 / np.sqrt(hidden_size)
    H = hidden_size
    lstm_raw = []
    for l in range(num_layers):
        d_in = input_size if l == 0 else hidden_size
        key, k1, k2, k3, k4 = jax.random.split(key, 5)
        w_ih = jax.random.uniform(k1, (4 * H, d_in), jnp.float32, -k, k)
        w_hh = jax.random.uniform(k2, (4 * H, H), jnp.float32, -k, k)
        b_ih = jax.random.uniform(k3, (4 * H,), jnp.float32, -k, k)
        b_hh = jax.random.uniform(k4, (4 * H,), jnp.float32, -k, k)
        lstm_raw.append((w_ih, w_hh, b_ih, b_hh))

    key, kf1, kf2 = jax.random.split(key, 3)
    fc_w = jax.random.uniform(kf1, (output_size, H), jnp.float32, -k, k)   # [O, H]
    fc_b = jax.random.uniform(kf2, (output_size,), jnp.float32, -k, k)
    return lstm_raw, (fc_w, fc_b)


def reference_forward(action, raw_params, hidden_size, num_layers, cond_input=None):
    """Pure-JAX reference (high precision, f32, PyTorch gate math)."""
    x = jnp.concatenate((cond_input, action), -1) if cond_input is not None else action
    lstm_raw, (fc_w, fc_b) = raw_params
    B, T, _ = x.shape
    H = hidden_size
    hp = jax.lax.Precision.HIGHEST
    seq = x
    h = jnp.zeros((B, H), jnp.float32)
    for (w_ih, w_hh, b_ih, b_hh) in lstm_raw:
        h = jnp.zeros((B, H), jnp.float32)
        c = jnp.zeros((B, H), jnp.float32)
        outs = []
        for t in range(T):
            xt = seq[:, t, :]
            gates = (jnp.dot(xt, w_ih.T, precision=hp)
                     + jnp.dot(h, w_hh.T, precision=hp) + b_ih + b_hh)
            i_g = jax.nn.sigmoid(gates[:, 0:H])
            f_g = jax.nn.sigmoid(gates[:, H:2 * H])
            g_g = jnp.tanh(gates[:, 2 * H:3 * H])
            o_g = jax.nn.sigmoid(gates[:, 3 * H:4 * H])
            c = f_g * c + i_g * g_g
            h = o_g * jnp.tanh(c)
            outs.append(h)
        seq = jnp.stack(outs, axis=1)
    return jnp.dot(h, fc_w.T, precision=hp) + fc_b


if __name__ == "__main__":
    B, T = 8, 8
    input_size, hidden_size, output_size, num_layers = 16, 32, 16, 2

    key = jax.random.PRNGKey(0)
    key, kx = jax.random.split(key)
    action = jax.random.normal(kx, (B, T, input_size), jnp.float32)
    raw_params = init_params(key, input_size, hidden_size, output_size, num_layers)

    out = lstm_encoder_forward(action, raw_params, hidden_size, num_layers)
    out = jax.block_until_ready(out)

    ref = reference_forward(action, raw_params, hidden_size, num_layers)
    assert out.shape == (B, output_size)
    np.testing.assert_allclose(np.asarray(out), np.asarray(ref), rtol=5e-2, atol=5e-2)

    print("KERNEL_OK")
</pallas_src>

<mosaic_0001>
module attributes {stable_mosaic.version = 11 : i64} {
  func.func @kernel(%arg0: memref<64x16xbf16, #tpu.memory_space<vmem>>, %arg1: memref<16x128xbf16, #tpu.memory_space<vmem>>, %arg2: memref<32x128xbf16, #tpu.memory_space<vmem>>, %arg3: memref<1x128xf32, #tpu.memory_space<vmem>>, %arg4: memref<32x128xbf16, #tpu.memory_space<vmem>>, %arg5: memref<32x128xbf16, #tpu.memory_space<vmem>>, %arg6: memref<1x128xf32, #tpu.memory_space<vmem>>, %arg7: memref<32x16xbf16, #tpu.memory_space<vmem>>, %arg8: memref<1x16xf32, #tpu.memory_space<vmem>>, %arg9: memref<8x16xf32, #tpu.memory_space<vmem>>) attributes {dimension_semantics = [], scalar_prefetch = 0 : i64, scratch_operands = 0 : i64, tpu.core_type = #tpu.core_type<tc>} {
    %c0 = arith.constant 0 : index
    %c0_0 = arith.constant 0 : index
    %0 = vector.load %arg0[%c0, %c0_0] : memref<64x16xbf16, #tpu.memory_space<vmem>>, vector<64x16xbf16>
    %c0_1 = arith.constant 0 : index
    %c0_2 = arith.constant 0 : index
    %1 = vector.load %arg1[%c0_1, %c0_2] : memref<16x128xbf16, #tpu.memory_space<vmem>>, vector<16x128xbf16>
    %c0_3 = arith.constant 0 : index
    %c0_4 = arith.constant 0 : index
    %2 = vector.load %arg2[%c0_3, %c0_4] : memref<32x128xbf16, #tpu.memory_space<vmem>>, vector<32x128xbf16>
    %c0_5 = arith.constant 0 : index
    %c0_6 = arith.constant 0 : index
    %3 = vector.load %arg3[%c0_5, %c0_6] : memref<1x128xf32, #tpu.memory_space<vmem>>, vector<1x128xf32>
    %cst = arith.constant dense<0.000000e+00> : vector<64x128xf32>
    %4 = tpu.matmul %0, %1, %cst {dimension_numbers = #tpu.dot_dimension_numbers<[1], [0], [0], [1], [0, 0, 1, 1], [], []>} : vector<64x16xbf16>, vector<16x128xbf16>, vector<64x128xf32> -> vector<64x128xf32>
    %5 = vector.broadcast %3 : vector<1x128xf32> to vector<64x128xf32>
    %6 = arith.addf %4, %5 : vector<64x128xf32>
    %cst_7 = arith.constant 0.000000e+00 : f32
    %7 = vector.broadcast %cst_7 : f32 to vector<8x32xf32>
    %cst_8 = arith.constant 0.000000e+00 : f32
    %8 = vector.broadcast %cst_8 : f32 to vector<8x32xf32>
    %9 = vector.extract_strided_slice %6 {offsets = [0, 0], sizes = [8, 128], strides = [1, 1]} : vector<64x128xf32> to vector<8x128xf32>
    %10 = arith.truncf %7 : vector<8x32xf32> to vector<8x32xbf16>
    %cst_9 = arith.constant dense<0.000000e+00> : vector<8x128xf32>
    %11 = tpu.matmul %10, %2, %cst_9 {dimension_numbers = #tpu.dot_dimension_numbers<[1], [0], [0], [1], [0, 0, 1, 1], [], []>} : vector<8x32xbf16>, vector<32x128xbf16>, vector<8x128xf32> -> vector<8x128xf32>
    %12 = arith.addf %9, %11 : vector<8x128xf32>
    %13 = arith.negf %12 : vector<8x128xf32>
    %14 = math.exp %13 : vector<8x128xf32>
    %cst_10 = arith.constant 1.000000e+00 : f32
    %15 = vector.broadcast %cst_10 : f32 to vector<8x128xf32>
    %16 = arith.addf %15, %14 : vector<8x128xf32>
    %17 = arith.divf %15, %16 : vector<8x128xf32>
    %18 = vector.extract_strided_slice %17 {offsets = [0, 0], sizes = [8, 32], strides = [1, 1]} : vector<8x128xf32> to vector<8x32xf32>
    %19 = vector.extract_strided_slice %17 {offsets = [0, 32], sizes = [8, 32], strides = [1, 1]} : vector<8x128xf32> to vector<8x32xf32>
    %20 = vector.extract_strided_slice %17 {offsets = [0, 64], sizes = [8, 32], strides = [1, 1]} : vector<8x128xf32> to vector<8x32xf32>
    %cst_11 = arith.constant 2.000000e+00 : f32
    %21 = vector.broadcast %cst_11 : f32 to vector<8x32xf32>
    %22 = arith.mulf %21, %20 : vector<8x32xf32>
    %cst_12 = arith.constant 1.000000e+00 : f32
    %23 = vector.broadcast %cst_12 : f32 to vector<8x32xf32>
    %24 = arith.subf %22, %23 : vector<8x32xf32>
    %25 = vector.extract_strided_slice %17 {offsets = [0, 96], sizes = [8, 32], strides = [1, 1]} : vector<8x128xf32> to vector<8x32xf32>
    %26 = arith.mulf %19, %8 : vector<8x32xf32>
    %27 = arith.mulf %18, %24 : vector<8x32xf32>
    %28 = arith.addf %26, %27 : vector<8x32xf32>
    %29 = math.tanh %28 : vector<8x32xf32>
    %30 = arith.mulf %25, %29 : vector<8x32xf32>
    %31 = arith.truncf %30 : vector<8x32xf32> to vector<8x32xbf16>
    %32 = vector.extract_strided_slice %6 {offsets = [8, 0], sizes = [8, 128], strides = [1, 1]} : vector<64x128xf32> to vector<8x128xf32>
    %33 = arith.truncf %30 : vector<8x32xf32> to vector<8x32xbf16>
    %cst_13 = arith.constant dense<0.000000e+00> : vector<8x128xf32>
    %34 = tpu.matmul %33, %2, %cst_13 {dimension_numbers = #tpu.dot_dimension_numbers<[1], [0], [0], [1], [0, 0, 1, 1], [], []>} : vector<8x32xbf16>, vector<32x128xbf16>, vector<8x128xf32> -> vector<8x128xf32>
    %35 = arith.addf %32, %34 : vector<8x128xf32>
    %36 = arith.negf %35 : vector<8x128xf32>
    %37 = math.exp %36 : vector<8x128xf32>
    %cst_14 = arith.constant 1.000000e+00 : f32
    %38 = vector.broadcast %cst_14 : f32 to vector<8x128xf32>
    %39 = arith.addf %38, %37 : vector<8x128xf32>
    %40 = arith.divf %38, %39 : vector<8x128xf32>
    %41 = vector.extract_strided_slice %40 {offsets = [0, 0], sizes = [8, 32], strides = [1, 1]} : vector<8x128xf32> to vector<8x32xf32>
    %42 = vector.extract_strided_slice %40 {offsets = [0, 32], sizes = [8, 32], strides = [1, 1]} : vector<8x128xf32> to vector<8x32xf32>
    %43 = vector.extract_strided_slice %40 {offsets = [0, 64], sizes = [8, 32], strides = [1, 1]} : vector<8x128xf32> to vector<8x32xf32>
    %cst_15 = arith.constant 2.000000e+00 : f32
    %44 = vector.broadcast %cst_15 : f32 to vector<8x32xf32>
    %45 = arith.mulf %44, %43 : vector<8x32xf32>
    %cst_16 = arith.constant 1.000000e+00 : f32
    %46 = vector.broadcast %cst_16 : f32 to vector<8x32xf32>
    %47 = arith.subf %45, %46 : vector<8x32xf32>
    %48 = vector.extract_strided_slice %40 {offsets = [0, 96], sizes = [8, 32], strides = [1, 1]} : vector<8x128xf32> to vector<8x32xf32>
    %49 = arith.mulf %42, %28 : vector<8x32xf32>
    %50 = arith.mulf %41, %47 : vector<8x32xf32>
    %51 = arith.addf %49, %50 : vector<8x32xf32>
    %52 = math.tanh %51 : vector<8x32xf32>
    %53 = arith.mulf %48, %52 : vector<8x32xf32>
    %54 = arith.truncf %53 : vector<8x32xf32> to vector<8x32xbf16>
    %55 = vector.extract_strided_slice %6 {offsets = [16, 0], sizes = [8, 128], strides = [1, 1]} : vector<64x128xf32> to vector<8x128xf32>
    %56 = arith.truncf %53 : vector<8x32xf32> to vector<8x32xbf16>
    %cst_17 = arith.constant dense<0.000000e+00> : vector<8x128xf32>
    %57 = tpu.matmul %56, %2, %cst_17 {dimension_numbers = #tpu.dot_dimension_numbers<[1], [0], [0], [1], [0, 0, 1, 1], [], []>} : vector<8x32xbf16>, vector<32x128xbf16>, vector<8x128xf32> -> vector<8x128xf32>
    %58 = arith.addf %55, %57 : vector<8x128xf32>
    %59 = arith.negf %58 : vector<8x128xf32>
    %60 = math.exp %59 : vector<8x128xf32>
    %cst_18 = arith.constant 1.000000e+00 : f32
    %61 = vector.broadcast %cst_18 : f32 to vector<8x128xf32>
    %62 = arith.addf %61, %60 : vector<8x128xf32>
    %63 = arith.divf %61, %62 : vector<8x128xf32>
    %64 = vector.extract_strided_slice %63 {offsets = [0, 0], sizes = [8, 32], strides = [1, 1]} : vector<8x128xf32> to vector<8x32xf32>
    %65 = vector.extract_strided_slice %63 {offsets = [0, 32], sizes = [8, 32], strides = [1, 1]} : vector<8x128xf32> to vector<8x32xf32>
    %66 = vector.extract_strided_slice %63 {offsets = [0, 64], sizes = [8, 32], strides = [1, 1]} : vector<8x128xf32> to vector<8x32xf32>
    %cst_19 = arith.constant 2.000000e+00 : f32
    %67 = vector.broadcast %cst_19 : f32 to vector<8x32xf32>
    %68 = arith.mulf %67, %66 : vector<8x32xf32>
    %cst_20 = arith.constant 1.000000e+00 : f32
    %69 = vector.broadcast %cst_20 : f32 to vector<8x32xf32>
    %70 = arith.subf %68, %69 : vector<8x32xf32>
    %71 = vector.extract_strided_slice %63 {offsets = [0, 96], sizes = [8, 32], strides = [1, 1]} : vector<8x128xf32> to vector<8x32xf32>
    %72 = arith.mulf %65, %51 : vector<8x32xf32>
    %73 = arith.mulf %64, %70 : vector<8x32xf32>
    %74 = arith.addf %72, %73 : vector<8x32xf32>
    %75 = math.tanh %74 : vector<8x32xf32>
    %76 = arith.mulf %71, %75 : vector<8x32xf32>
    %77 = arith.truncf %76 : vector<8x32xf32> to vector<8x32xbf16>
    %78 = vector.extract_strided_slice %6 {offsets = [24, 0], sizes = [8, 128], strides = [1, 1]} : vector<64x128xf32> to vector<8x128xf32>
    %79 = arith.truncf %76 : vector<8x32xf32> to vector<8x32xbf16>
    %cst_21 = arith.constant dense<0.000000e+00> : vector<8x128xf32>
    %80 = tpu.matmul %79, %2, %cst_21 {dimension_numbers = #tpu.dot_dimension_numbers<[1], [0], [0], [1], [0, 0, 1, 1], [], []>} : vector<8x32xbf16>, vector<32x128xbf16>, vector<8x128xf32> -> vector<8x128xf32>
    %81 = arith.addf %78, %80 : vector<8x128xf32>
    %82 = arith.negf %81 : vector<8x128xf32>
    %83 = math.exp %82 : vector<8x128xf32>
    %cst_22 = arith.constant 1.000000e+00 : f32
    %84 = vector.broadcast %cst_22 : f32 to vector<8x128xf32>
    %85 = arith.addf %84, %83 : vector<8x128xf32>
    %86 = arith.divf %84, %85 : vector<8x128xf32>
    %87 = vector.extract_strided_slice %86 {offsets = [0, 0], sizes = [8, 32], strides = [1, 1]} : vector<8x128xf32> to vector<8x32xf32>
    %88 = vector.extract_strided_slice %86 {offsets = [0, 32], sizes = [8, 32], strides = [1, 1]} : vector<8x128xf32> to vector<8x32xf32>
    %89 = vector.extract_strided_slice %86 {offsets = [0, 64], sizes = [8, 32], strides = [1, 1]} : vector<8x128xf32> to vector<8x32xf32>
    %cst_23 = arith.constant 2.000000e+00 : f32
    %90 = vector.broadcast %cst_23 : f32 to vector<8x32xf32>
    %91 = arith.mulf %90, %89 : vector<8x32xf32>
    %cst_24 = arith.constant 1.000000e+00 : f32
    %92 = vector.broadcast %cst_24 : f32 to vector<8x32xf32>
    %93 = arith.subf %91, %92 : vector<8x32xf32>
    %94 = vector.extract_strided_slice %86 {offsets = [0, 96], sizes = [8, 32], strides = [1, 1]} : vector<8x128xf32> to vector<8x32xf32>
    %95 = arith.mulf %88, %74 : vector<8x32xf32>
    %96 = arith.mulf %87, %93 : vector<8x32xf32>
    %97 = arith.addf %95, %96 : vector<8x32xf32>
    %98 = math.tanh %97 : vector<8x32xf32>
    %99 = arith.mulf %94, %98 : vector<8x32xf32>
    %100 = arith.truncf %99 : vector<8x32xf32> to vector<8x32xbf16>
    %101 = vector.extract_strided_slice %6 {offsets = [32, 0], sizes = [8, 128], strides = [1, 1]} : vector<64x128xf32> to vector<8x128xf32>
    %102 = arith.truncf %99 : vector<8x32xf32> to vector<8x32xbf16>
    %cst_25 = arith.constant dense<0.000000e+00> : vector<8x128xf32>
    %103 = tpu.matmul %102, %2, %cst_25 {dimension_numbers = #tpu.dot_dimension_numbers<[1], [0], [0], [1], [0, 0, 1, 1], [], []>} : vector<8x32xbf16>, vector<32x128xbf16>, vector<8x128xf32> -> vector<8x128xf32>
    %104 = arith.addf %101, %103 : vector<8x128xf32>
    %105 = arith.negf %104 : vector<8x128xf32>
    %106 = math.exp %105 : vector<8x128xf32>
    %cst_26 = arith.constant 1.000000e+00 : f32
    %107 = vector.broadcast %cst_26 : f32 to vector<8x128xf32>
    %108 = arith.addf %107, %106 : vector<8x128xf32>
    %109 = arith.divf %107, %108 : vector<8x128xf32>
    %110 = vector.extract_strided_slice %109 {offsets = [0, 0], sizes = [8, 32], strides = [1, 1]} : vector<8x128xf32> to vector<8x32xf32>
    %111 = vector.extract_strided_slice %109 {offsets = [0, 32], sizes = [8, 32], strides = [1, 1]} : vector<8x128xf32> to vector<8x32xf32>
    %112 = vector.extract_strided_slice %109 {offsets = [0, 64], sizes = [8, 32], strides = [1, 1]} : vector<8x128xf32> to vector<8x32xf32>
    %cst_27 = arith.constant 2.000000e+00 : f32
    %113 = vector.broadcast %cst_27 : f32 to vector<8x32xf32>
    %114 = arith.mulf %113, %112 : vector<8x32xf32>
    %cst_28 = arith.constant 1.000000e+00 : f32
    %115 = vector.broadcast %cst_28 : f32 to vector<8x32xf32>
    %116 = arith.subf %114, %115 : vector<8x32xf32>
    %117 = vector.extract_strided_slice %109 {offsets = [0, 96], sizes = [8, 32], strides = [1, 1]} : vector<8x128xf32> to vector<8x32xf32>
    %118 = arith.mulf %111, %97 : vector<8x32xf32>
    %119 = arith.mulf %110, %116 : vector<8x32xf32>
    %120 = arith.addf %118, %119 : vector<8x32xf32>
    %121 = math.tanh %120 : vector<8x32xf32>
    %122 = arith.mulf %117, %121 : vector<8x32xf32>
    %123 = arith.truncf %122 : vector<8x32xf32> to vector<8x32xbf16>
    %124 = vector.extract_strided_slice %6 {offsets = [40, 0], sizes = [8, 128], strides = [1, 1]} : vector<64x128xf32> to vector<8x128xf32>
    %125 = arith.truncf %122 : vector<8x32xf32> to vector<8x32xbf16>
    %cst_29 = arith.constant dense<0.000000e+00> : vector<8x128xf32>
    %126 = tpu.matmul %125, %2, %cst_29 {dimension_numbers = #tpu.dot_dimension_numbers<[1], [0], [0], [1], [0, 0, 1, 1], [], []>} : vector<8x32xbf16>, vector<32x128xbf16>, vector<8x128xf32> -> vector<8x128xf32>
    %127 = arith.addf %124, %126 : vector<8x128xf32>
    %128 = arith.negf %127 : vector<8x128xf32>
    %129 = math.exp %128 : vector<8x128xf32>
    %cst_30 = arith.constant 1.000000e+00 : f32
    %130 = vector.broadcast %cst_30 : f32 to vector<8x128xf32>
    %131 = arith.addf %130, %129 : vector<8x128xf32>
    %132 = arith.divf %130, %131 : vector<8x128xf32>
    %133 = vector.extract_strided_slice %132 {offsets = [0, 0], sizes = [8, 32], strides = [1, 1]} : vector<8x128xf32> to vector<8x32xf32>
    %134 = vector.extract_strided_slice %132 {offsets = [0, 32], sizes = [8, 32], strides = [1, 1]} : vector<8x128xf32> to vector<8x32xf32>
    %135 = vector.extract_strided_slice %132 {offsets = [0, 64], sizes = [8, 32], strides = [1, 1]} : vector<8x128xf32> to vector<8x32xf32>
    %cst_31 = arith.constant 2.000000e+00 : f32
    %136 = vector.broadcast %cst_31 : f32 to vector<8x32xf32>
    %137 = arith.mulf %136, %135 : vector<8x32xf32>
    %cst_32 = arith.constant 1.000000e+00 : f32
    %138 = vector.broadcast %cst_32 : f32 to vector<8x32xf32>
    %139 = arith.subf %137, %138 : vector<8x32xf32>
    %140 = vector.extract_strided_slice %132 {offsets = [0, 96], sizes = [8, 32], strides = [1, 1]} : vector<8x128xf32> to vector<8x32xf32>
    %141 = arith.mulf %134, %120 : vector<8x32xf32>
    %142 = arith.mulf %133, %139 : vector<8x32xf32>
    %143 = arith.addf %141, %142 : vector<8x32xf32>
    %144 = math.tanh %143 : vector<8x32xf32>
    %145 = arith.mulf %140, %144 : vector<8x32xf32>
    %146 = arith.truncf %145 : vector<8x32xf32> to vector<8x32xbf16>
    %147 = vector.extract_strided_slice %6 {offsets = [48, 0], sizes = [8, 128], strides = [1, 1]} : vector<64x128xf32> to vector<8x128xf32>
    %148 = arith.truncf %145 : vector<8x32xf32> to vector<8x32xbf16>
    %cst_33 = arith.constant dense<0.000000e+00> : vector<8x128xf32>
    %149 = tpu.matmul %148, %2, %cst_33 {dimension_numbers = #tpu.dot_dimension_numbers<[1], [0], [0], [1], [0, 0, 1, 1], [], []>} : vector<8x32xbf16>, vector<32x128xbf16>, vector<8x128xf32> -> vector<8x128xf32>
    %150 = arith.addf %147, %149 : vector<8x128xf32>
    %151 = arith.negf %150 : vector<8x128xf32>
    %152 = math.exp %151 : vector<8x128xf32>
    %cst_34 = arith.constant 1.000000e+00 : f32
    %153 = vector.broadcast %cst_34 : f32 to vector<8x128xf32>
    %154 = arith.addf %153, %152 : vector<8x128xf32>
    %155 = arith.divf %153, %154 : vector<8x128xf32>
    %156 = vector.extract_strided_slice %155 {offsets = [0, 0], sizes = [8, 32], strides = [1, 1]} : vector<8x128xf32> to vector<8x32xf32>
    %157 = vector.extract_strided_slice %155 {offsets = [0, 32], sizes = [8, 32], strides = [1, 1]} : vector<8x128xf32> to vector<8x32xf32>
    %158 = vector.extract_strided_slice %155 {offsets = [0, 64], sizes = [8, 32], strides = [1, 1]} : vector<8x128xf32> to vector<8x32xf32>
    %cst_35 = arith.constant 2.000000e+00 : f32
    %159 = vector.broadcast %cst_35 : f32 to vector<8x32xf32>
    %160 = arith.mulf %159, %158 : vector<8x32xf32>
    %cst_36 = arith.constant 1.000000e+00 : f32
    %161 = vector.broadcast %cst_36 : f32 to vector<8x32xf32>
    %162 = arith.subf %160, %161 : vector<8x32xf32>
    %163 = vector.extract_strided_slice %155 {offsets = [0, 96], sizes = [8, 32], strides = [1, 1]} : vector<8x128xf32> to vector<8x32xf32>
    %164 = arith.mulf %157, %143 : vector<8x32xf32>
    %165 = arith.mulf %156, %162 : vector<8x32xf32>
    %166 = arith.addf %164, %165 : vector<8x32xf32>
    %167 = math.tanh %166 : vector<8x32xf32>
    %168 = arith.mulf %163, %167 : vector<8x32xf32>
    %169 = arith.truncf %168 : vector<8x32xf32> to vector<8x32xbf16>
    %170 = vector.extract_strided_slice %6 {offsets = [56, 0], sizes = [8, 128], strides = [1, 1]} : vector<64x128xf32> to vector<8x128xf32>
    %171 = arith.truncf %168 : vector<8x32xf32> to vector<8x32xbf16>
    %cst_37 = arith.constant dense<0.000000e+00> : vector<8x128xf32>
    %172 = tpu.matmul %171, %2, %cst_37 {dimension_numbers = #tpu.dot_dimension_numbers<[1], [0], [0], [1], [0, 0, 1, 1], [], []>} : vector<8x32xbf16>, vector<32x128xbf16>, vector<8x128xf32> -> vector<8x128xf32>
    %173 = arith.addf %170, %172 : vector<8x128xf32>
    %174 = arith.negf %173 : vector<8x128xf32>
    %175 = math.exp %174 : vector<8x128xf32>
    %cst_38 = arith.constant 1.000000e+00 : f32
    %176 = vector.broadcast %cst_38 : f32 to vector<8x128xf32>
    %177 = arith.addf %176, %175 : vector<8x128xf32>
    %178 = arith.divf %176, %177 : vector<8x128xf32>
    %179 = vector.extract_strided_slice %178 {offsets = [0, 0], sizes = [8, 32], strides = [1, 1]} : vector<8x128xf32> to vector<8x32xf32>
    %180 = vector.extract_strided_slice %178 {offsets = [0, 32], sizes = [8, 32], strides = [1, 1]} : vector<8x128xf32> to vector<8x32xf32>
    %181 = vector.extract_strided_slice %178 {offsets = [0, 64], sizes = [8, 32], strides = [1, 1]} : vector<8x128xf32> to vector<8x32xf32>
    %cst_39 = arith.constant 2.000000e+00 : f32
    %182 = vector.broadcast %cst_39 : f32 to vector<8x32xf32>
    %183 = arith.mulf %182, %181 : vector<8x32xf32>
    %cst_40 = arith.constant 1.000000e+00 : f32
    %184 = vector.broadcast %cst_40 : f32 to vector<8x32xf32>
    %185 = arith.subf %183, %184 : vector<8x32xf32>
    %186 = vector.extract_strided_slice %178 {offsets = [0, 96], sizes = [8, 32], strides = [1, 1]} : vector<8x128xf32> to vector<8x32xf32>
    %187 = arith.mulf %180, %166 : vector<8x32xf32>
    %188 = arith.mulf %179, %185 : vector<8x32xf32>
    %189 = arith.addf %187, %188 : vector<8x32xf32>
    %190 = math.tanh %189 : vector<8x32xf32>
    %191 = arith.mulf %186, %190 : vector<8x32xf32>
    %192 = arith.truncf %191 : vector<8x32xf32> to vector<8x32xbf16>
    %193 = tpu.concatenate %31, %54, %77, %100, %123, %146, %169, %192 in 0 : vector<8x32xbf16>, vector<8x32xbf16>, vector<8x32xbf16>, vector<8x32xbf16>, vector<8x32xbf16>, vector<8x32xbf16>, vector<8x32xbf16>, vector<8x32xbf16> -> vector<64x32xbf16>
    %c0_41 = arith.constant 0 : index
    %c0_42 = arith.constant 0 : index
    %194 = vector.load %arg4[%c0_41, %c0_42] : memref<32x128xbf16, #tpu.memory_space<vmem>>, vector<32x128xbf16>
    %c0_43 = arith.constant 0 : index
    %c0_44 = arith.constant 0 : index
    %195 = vector.load %arg5[%c0_43, %c0_44] : memref<32x128xbf16, #tpu.memory_space<vmem>>, vector<32x128xbf16>
    %c0_45 = arith.constant 0 : index
    %c0_46 = arith.constant 0 : index
    %196 = vector.load %arg6[%c0_45, %c0_46] : memref<1x128xf32, #tpu.memory_space<vmem>>, vector<1x128xf32>
    %cst_47 = arith.constant dense<0.000000e+00> : vector<64x128xf32>
    %197 = tpu.matmul %193, %194, %cst_47 {dimension_numbers = #tpu.dot_dimension_numbers<[1], [0], [0], [1], [0, 0, 1, 1], [], []>} : vector<64x32xbf16>, vector<32x128xbf16>, vector<64x128xf32> -> vector<64x128xf32>
    %198 = vector.broadcast %196 : vector<1x128xf32> to vector<64x128xf32>
    %199 = arith.addf %197, %198 : vector<64x128xf32>
    %cst_48 = arith.constant 0.000000e+00 : f32
    %200 = vector.broadcast %cst_48 : f32 to vector<8x32xf32>
    %cst_49 = arith.constant 0.000000e+00 : f32
    %201 = vector.broadcast %cst_49 : f32 to vector<8x32xf32>
    %202 = vector.extract_strided_slice %199 {offsets = [0, 0], sizes = [8, 128], strides = [1, 1]} : vector<64x128xf32> to vector<8x128xf32>
    %203 = arith.truncf %200 : vector<8x32xf32> to vector<8x32xbf16>
    %cst_50 = arith.constant dense<0.000000e+00> : vector<8x128xf32>
    %204 = tpu.matmul %203, %195, %cst_50 {dimension_numbers = #tpu.dot_dimension_numbers<[1], [0], [0], [1], [0, 0, 1, 1], [], []>} : vector<8x32xbf16>, vector<32x128xbf16>, vector<8x128xf32> -> vector<8x128xf32>
    %205 = arith.addf %202, %204 : vector<8x128xf32>
    %206 = arith.negf %205 : vector<8x128xf32>
    %207 = math.exp %206 : vector<8x128xf32>
    %cst_51 = arith.constant 1.000000e+00 : f32
    %208 = vector.broadcast %cst_51 : f32 to vector<8x128xf32>
    %209 = arith.addf %208, %207 : vector<8x128xf32>
    %210 = arith.divf %208, %209 : vector<8x128xf32>
    %211 = vector.extract_strided_slice %210 {offsets = [0, 0], sizes = [8, 32], strides = [1, 1]} : vector<8x128xf32> to vector<8x32xf32>
    %212 = vector.extract_strided_slice %210 {offsets = [0, 32], sizes = [8, 32], strides = [1, 1]} : vector<8x128xf32> to vector<8x32xf32>
    %213 = vector.extract_strided_slice %210 {offsets = [0, 64], sizes = [8, 32], strides = [1, 1]} : vector<8x128xf32> to vector<8x32xf32>
    %cst_52 = arith.constant 2.000000e+00 : f32
    %214 = vector.broadcast %cst_52 : f32 to vector<8x32xf32>
    %215 = arith.mulf %214, %213 : vector<8x32xf32>
    %cst_53 = arith.constant 1.000000e+00 : f32
    %216 = vector.broadcast %cst_53 : f32 to vector<8x32xf32>
    %217 = arith.subf %215, %216 : vector<8x32xf32>
    %218 = vector.extract_strided_slice %210 {offsets = [0, 96], sizes = [8, 32], strides = [1, 1]} : vector<8x128xf32> to vector<8x32xf32>
    %219 = arith.mulf %212, %201 : vector<8x32xf32>
    %220 = arith.mulf %211, %217 : vector<8x32xf32>
    %221 = arith.addf %219, %220 : vector<8x32xf32>
    %222 = math.tanh %221 : vector<8x32xf32>
    %223 = arith.mulf %218, %222 : vector<8x32xf32>
    %224 = vector.extract_strided_slice %199 {offsets = [8, 0], sizes = [8, 128], strides = [1, 1]} : vector<64x128xf32> to vector<8x128xf32>
    %225 = arith.truncf %223 : vector<8x32xf32> to vector<8x32xbf16>
    %cst_54 = arith.constant dense<0.000000e+00> : vector<8x128xf32>
    %226 = tpu.matmul %225, %195, %cst_54 {dimension_numbers = #tpu.dot_dimension_numbers<[1], [0], [0], [1], [0, 0, 1, 1], [], []>} : vector<8x32xbf16>, vector<32x128xbf16>, vector<8x128xf32> -> vector<8x128xf32>
    %227 = arith.addf %224, %226 : vector<8x128xf32>
    %228 = arith.negf %227 : vector<8x128xf32>
    %229 = math.exp %228 : vector<8x128xf32>
    %cst_55 = arith.constant 1.000000e+00 : f32
    %230 = vector.broadcast %cst_55 : f32 to vector<8x128xf32>
    %231 = arith.addf %230, %229 : vector<8x128xf32>
    %232 = arith.divf %230, %231 : vector<8x128xf32>
    %233 = vector.extract_strided_slice %232 {offsets = [0, 0], sizes = [8, 32], strides = [1, 1]} : vector<8x128xf32> to vector<8x32xf32>
    %234 = vector.extract_strided_slice %232 {offsets = [0, 32], sizes = [8, 32], strides = [1, 1]} : vector<8x128xf32> to vector<8x32xf32>
    %235 = vector.extract_strided_slice %232 {offsets = [0, 64], sizes = [8, 32], strides = [1, 1]} : vector<8x128xf32> to vector<8x32xf32>
    %cst_56 = arith.constant 2.000000e+00 : f32
    %236 = vector.broadcast %cst_56 : f32 to vector<8x32xf32>
    %237 = arith.mulf %236, %235 : vector<8x32xf32>
    %cst_57 = arith.constant 1.000000e+00 : f32
    %238 = vector.broadcast %cst_57 : f32 to vector<8x32xf32>
    %239 = arith.subf %237, %238 : vector<8x32xf32>
    %240 = vector.extract_strided_slice %232 {offsets = [0, 96], sizes = [8, 32], strides = [1, 1]} : vector<8x128xf32> to vector<8x32xf32>
    %241 = arith.mulf %234, %221 : vector<8x32xf32>
    %242 = arith.mulf %233, %239 : vector<8x32xf32>
    %243 = arith.addf %241, %242 : vector<8x32xf32>
    %244 = math.tanh %243 : vector<8x32xf32>
    %245 = arith.mulf %240, %244 : vector<8x32xf32>
    %246 = vector.extract_strided_slice %199 {offsets = [16, 0], sizes = [8, 128], strides = [1, 1]} : vector<64x128xf32> to vector<8x128xf32>
    %247 = arith.truncf %245 : vector<8x32xf32> to vector<8x32xbf16>
    %cst_58 = arith.constant dense<0.000000e+00> : vector<8x128xf32>
    %248 = tpu.matmul %247, %195, %cst_58 {dimension_numbers = #tpu.dot_dimension_numbers<[1], [0], [0], [1], [0, 0, 1, 1], [], []>} : vector<8x32xbf16>, vector<32x128xbf16>, vector<8x128xf32> -> vector<8x128xf32>
    %249 = arith.addf %246, %248 : vector<8x128xf32>
    %250 = arith.negf %249 : vector<8x128xf32>
    %251 = math.exp %250 : vector<8x128xf32>
    %cst_59 = arith.constant 1.000000e+00 : f32
    %252 = vector.broadcast %cst_59 : f32 to vector<8x128xf32>
    %253 = arith.addf %252, %251 : vector<8x128xf32>
    %254 = arith.divf %252, %253 : vector<8x128xf32>
    %255 = vector.extract_strided_slice %254 {offsets = [0, 0], sizes = [8, 32], strides = [1, 1]} : vector<8x128xf32> to vector<8x32xf32>
    %256 = vector.extract_strided_slice %254 {offsets = [0, 32], sizes = [8, 32], strides = [1, 1]} : vector<8x128xf32> to vector<8x32xf32>
    %257 = vector.extract_strided_slice %254 {offsets = [0, 64], sizes = [8, 32], strides = [1, 1]} : vector<8x128xf32> to vector<8x32xf32>
    %cst_60 = arith.constant 2.000000e+00 : f32
    %258 = vector.broadcast %cst_60 : f32 to vector<8x32xf32>
    %259 = arith.mulf %258, %257 : vector<8x32xf32>
    %cst_61 = arith.constant 1.000000e+00 : f32
    %260 = vector.broadcast %cst_61 : f32 to vector<8x32xf32>
    %261 = arith.subf %259, %260 : vector<8x32xf32>
    %262 = vector.extract_strided_slice %254 {offsets = [0, 96], sizes = [8, 32], strides = [1, 1]} : vector<8x128xf32> to vector<8x32xf32>
    %263 = arith.mulf %256, %243 : vector<8x32xf32>
    %264 = arith.mulf %255, %261 : vector<8x32xf32>
    %265 = arith.addf %263, %264 : vector<8x32xf32>
    %266 = math.tanh %265 : vector<8x32xf32>
    %267 = arith.mulf %262, %266 : vector<8x32xf32>
    %268 = vector.extract_strided_slice %199 {offsets = [24, 0], sizes = [8, 128], strides = [1, 1]} : vector<64x128xf32> to vector<8x128xf32>
    %269 = arith.truncf %267 : vector<8x32xf32> to vector<8x32xbf16>
    %cst_62 = arith.constant dense<0.000000e+00> : vector<8x128xf32>
    %270 = tpu.matmul %269, %195, %cst_62 {dimension_numbers = #tpu.dot_dimension_numbers<[1], [0], [0], [1], [0, 0, 1, 1], [], []>} : vector<8x32xbf16>, vector<32x128xbf16>, vector<8x128xf32> -> vector<8x128xf32>
    %271 = arith.addf %268, %270 : vector<8x128xf32>
    %272 = arith.negf %271 : vector<8x128xf32>
    %273 = math.exp %272 : vector<8x128xf32>
    %cst_63 = arith.constant 1.000000e+00 : f32
    %274 = vector.broadcast %cst_63 : f32 to vector<8x128xf32>
    %275 = arith.addf %274, %273 : vector<8x128xf32>
    %276 = arith.divf %274, %275 : vector<8x128xf32>
    %277 = vector.extract_strided_slice %276 {offsets = [0, 0], sizes = [8, 32], strides = [1, 1]} : vector<8x128xf32> to vector<8x32xf32>
    %278 = vector.extract_strided_slice %276 {offsets = [0, 32], sizes = [8, 32], strides = [1, 1]} : vector<8x128xf32> to vector<8x32xf32>
    %279 = vector.extract_strided_slice %276 {offsets = [0, 64], sizes = [8, 32], strides = [1, 1]} : vector<8x128xf32> to vector<8x32xf32>
    %cst_64 = arith.constant 2.000000e+00 : f32
    %280 = vector.broadcast %cst_64 : f32 to vector<8x32xf32>
    %281 = arith.mulf %280, %279 : vector<8x32xf32>
    %cst_65 = arith.constant 1.000000e+00 : f32
    %282 = vector.broadcast %cst_65 : f32 to vector<8x32xf32>
    %283 = arith.subf %281, %282 : vector<8x32xf32>
    %284 = vector.extract_strided_slice %276 {offsets = [0, 96], sizes = [8, 32], strides = [1, 1]} : vector<8x128xf32> to vector<8x32xf32>
    %285 = arith.mulf %278, %265 : vector<8x32xf32>
    %286 = arith.mulf %277, %283 : vector<8x32xf32>
    %287 = arith.addf %285, %286 : vector<8x32xf32>
    %288 = math.tanh %287 : vector<8x32xf32>
    %289 = arith.mulf %284, %288 : vector<8x32xf32>
    %290 = vector.extract_strided_slice %199 {offsets = [32, 0], sizes = [8, 128], strides = [1, 1]} : vector<64x128xf32> to vector<8x128xf32>
    %291 = arith.truncf %289 : vector<8x32xf32> to vector<8x32xbf16>
    %cst_66 = arith.constant dense<0.000000e+00> : vector<8x128xf32>
    %292 = tpu.matmul %291, %195, %cst_66 {dimension_numbers = #tpu.dot_dimension_numbers<[1], [0], [0], [1], [0, 0, 1, 1], [], []>} : vector<8x32xbf16>, vector<32x128xbf16>, vector<8x128xf32> -> vector<8x128xf32>
    %293 = arith.addf %290, %292 : vector<8x128xf32>
    %294 = arith.negf %293 : vector<8x128xf32>
    %295 = math.exp %294 : vector<8x128xf32>
    %cst_67 = arith.constant 1.000000e+00 : f32
    %296 = vector.broadcast %cst_67 : f32 to vector<8x128xf32>
    %297 = arith.addf %296, %295 : vector<8x128xf32>
    %298 = arith.divf %296, %297 : vector<8x128xf32>
    %299 = vector.extract_strided_slice %298 {offsets = [0, 0], sizes = [8, 32], strides = [1, 1]} : vector<8x128xf32> to vector<8x32xf32>
    %300 = vector.extract_strided_slice %298 {offsets = [0, 32], sizes = [8, 32], strides = [1, 1]} : vector<8x128xf32> to vector<8x32xf32>
    %301 = vector.extract_strided_slice %298 {offsets = [0, 64], sizes = [8, 32], strides = [1, 1]} : vector<8x128xf32> to vector<8x32xf32>
    %cst_68 = arith.constant 2.000000e+00 : f32
    %302 = vector.broadcast %cst_68 : f32 to vector<8x32xf32>
    %303 = arith.mulf %302, %301 : vector<8x32xf32>
    %cst_69 = arith.constant 1.000000e+00 : f32
    %304 = vector.broadcast %cst_69 : f32 to vector<8x32xf32>
    %305 = arith.subf %303, %304 : vector<8x32xf32>
    %306 = vector.extract_strided_slice %298 {offsets = [0, 96], sizes = [8, 32], strides = [1, 1]} : vector<8x128xf32> to vector<8x32xf32>
    %307 = arith.mulf %300, %287 : vector<8x32xf32>
    %308 = arith.mulf %299, %305 : vector<8x32xf32>
    %309 = arith.addf %307, %308 : vector<8x32xf32>
    %310 = math.tanh %309 : vector<8x32xf32>
    %311 = arith.mulf %306, %310 : vector<8x32xf32>
    %312 = vector.extract_strided_slice %199 {offsets = [40, 0], sizes = [8, 128], strides = [1, 1]} : vector<64x128xf32> to vector<8x128xf32>
    %313 = arith.truncf %311 : vector<8x32xf32> to vector<8x32xbf16>
    %cst_70 = arith.constant dense<0.000000e+00> : vector<8x128xf32>
    %314 = tpu.matmul %313, %195, %cst_70 {dimension_numbers = #tpu.dot_dimension_numbers<[1], [0], [0], [1], [0, 0, 1, 1], [], []>} : vector<8x32xbf16>, vector<32x128xbf16>, vector<8x128xf32> -> vector<8x128xf32>
    %315 = arith.addf %312, %314 : vector<8x128xf32>
    %316 = arith.negf %315 : vector<8x128xf32>
    %317 = math.exp %316 : vector<8x128xf32>
    %cst_71 = arith.constant 1.000000e+00 : f32
    %318 = vector.broadcast %cst_71 : f32 to vector<8x128xf32>
    %319 = arith.addf %318, %317 : vector<8x128xf32>
    %320 = arith.divf %318, %319 : vector<8x128xf32>
    %321 = vector.extract_strided_slice %320 {offsets = [0, 0], sizes = [8, 32], strides = [1, 1]} : vector<8x128xf32> to vector<8x32xf32>
    %322 = vector.extract_strided_slice %320 {offsets = [0, 32], sizes = [8, 32], strides = [1, 1]} : vector<8x128xf32> to vector<8x32xf32>
    %323 = vector.extract_strided_slice %320 {offsets = [0, 64], sizes = [8, 32], strides = [1, 1]} : vector<8x128xf32> to vector<8x32xf32>
    %cst_72 = arith.constant 2.000000e+00 : f32
    %324 = vector.broadcast %cst_72 : f32 to vector<8x32xf32>
    %325 = arith.mulf %324, %323 : vector<8x32xf32>
    %cst_73 = arith.constant 1.000000e+00 : f32
    %326 = vector.broadcast %cst_73 : f32 to vector<8x32xf32>
    %327 = arith.subf %325, %326 : vector<8x32xf32>
    %328 = vector.extract_strided_slice %320 {offsets = [0, 96], sizes = [8, 32], strides = [1, 1]} : vector<8x128xf32> to vector<8x32xf32>
    %329 = arith.mulf %322, %309 : vector<8x32xf32>
    %330 = arith.mulf %321, %327 : vector<8x32xf32>
    %331 = arith.addf %329, %330 : vector<8x32xf32>
    %332 = math.tanh %331 : vector<8x32xf32>
    %333 = arith.mulf %328, %332 : vector<8x32xf32>
    %334 = vector.extract_strided_slice %199 {offsets = [48, 0], sizes = [8, 128], strides = [1, 1]} : vector<64x128xf32> to vector<8x128xf32>
    %335 = arith.truncf %333 : vector<8x32xf32> to vector<8x32xbf16>
    %cst_74 = arith.constant dense<0.000000e+00> : vector<8x128xf32>
    %336 = tpu.matmul %335, %195, %cst_74 {dimension_numbers = #tpu.dot_dimension_numbers<[1], [0], [0], [1], [0, 0, 1, 1], [], []>} : vector<8x32xbf16>, vector<32x128xbf16>, vector<8x128xf32> -> vector<8x128xf32>
    %337 = arith.addf %334, %336 : vector<8x128xf32>
    %338 = arith.negf %337 : vector<8x128xf32>
    %339 = math.exp %338 : vector<8x128xf32>
    %cst_75 = arith.constant 1.000000e+00 : f32
    %340 = vector.broadcast %cst_75 : f32 to vector<8x128xf32>
    %341 = arith.addf %340, %339 : vector<8x128xf32>
    %342 = arith.divf %340, %341 : vector<8x128xf32>
    %343 = vector.extract_strided_slice %342 {offsets = [0, 0], sizes = [8, 32], strides = [1, 1]} : vector<8x128xf32> to vector<8x32xf32>
    %344 = vector.extract_strided_slice %342 {offsets = [0, 32], sizes = [8, 32], strides = [1, 1]} : vector<8x128xf32> to vector<8x32xf32>
    %345 = vector.extract_strided_slice %342 {offsets = [0, 64], sizes = [8, 32], strides = [1, 1]} : vector<8x128xf32> to vector<8x32xf32>
    %cst_76 = arith.constant 2.000000e+00 : f32
    %346 = vector.broadcast %cst_76 : f32 to vector<8x32xf32>
    %347 = arith.mulf %346, %345 : vector<8x32xf32>
    %cst_77 = arith.constant 1.000000e+00 : f32
    %348 = vector.broadcast %cst_77 : f32 to vector<8x32xf32>
    %349 = arith.subf %347, %348 : vector<8x32xf32>
    %350 = vector.extract_strided_slice %342 {offsets = [0, 96], sizes = [8, 32], strides = [1, 1]} : vector<8x128xf32> to vector<8x32xf32>
    %351 = arith.mulf %344, %331 : vector<8x32xf32>
    %352 = arith.mulf %343, %349 : vector<8x32xf32>
    %353 = arith.addf %351, %352 : vector<8x32xf32>
    %354 = math.tanh %353 : vector<8x32xf32>
    %355 = arith.mulf %350, %354 : vector<8x32xf32>
    %356 = vector.extract_strided_slice %199 {offsets = [56, 0], sizes = [8, 128], strides = [1, 1]} : vector<64x128xf32> to vector<8x128xf32>
    %357 = arith.truncf %355 : vector<8x32xf32> to vector<8x32xbf16>
    %cst_78 = arith.constant dense<0.000000e+00> : vector<8x128xf32>
    %358 = tpu.matmul %357, %195, %cst_78 {dimension_numbers = #tpu.dot_dimension_numbers<[1], [0], [0], [1], [0, 0, 1, 1], [], []>} : vector<8x32xbf16>, vector<32x128xbf16>, vector<8x128xf32> -> vector<8x128xf32>
    %359 = arith.addf %356, %358 : vector<8x128xf32>
    %360 = arith.negf %359 : vector<8x128xf32>
    %361 = math.exp %360 : vector<8x128xf32>
    %cst_79 = arith.constant 1.000000e+00 : f32
    %362 = vector.broadcast %cst_79 : f32 to vector<8x128xf32>
    %363 = arith.addf %362, %361 : vector<8x128xf32>
    %364 = arith.divf %362, %363 : vector<8x128xf32>
    %365 = vector.extract_strided_slice %364 {offsets = [0, 0], sizes = [8, 32], strides = [1, 1]} : vector<8x128xf32> to vector<8x32xf32>
    %366 = vector.extract_strided_slice %364 {offsets = [0, 32], sizes = [8, 32], strides = [1, 1]} : vector<8x128xf32> to vector<8x32xf32>
    %367 = vector.extract_strided_slice %364 {offsets = [0, 64], sizes = [8, 32], strides = [1, 1]} : vector<8x128xf32> to vector<8x32xf32>
    %cst_80 = arith.constant 2.000000e+00 : f32
    %368 = vector.broadcast %cst_80 : f32 to vector<8x32xf32>
    %369 = arith.mulf %368, %367 : vector<8x32xf32>
    %cst_81 = arith.constant 1.000000e+00 : f32
    %370 = vector.broadcast %cst_81 : f32 to vector<8x32xf32>
    %371 = arith.subf %369, %370 : vector<8x32xf32>
    %372 = vector.extract_strided_slice %364 {offsets = [0, 96], sizes = [8, 32], strides = [1, 1]} : vector<8x128xf32> to vector<8x32xf32>
    %373 = arith.mulf %366, %353 : vector<8x32xf32>
    %374 = arith.mulf %365, %371 : vector<8x32xf32>
    %375 = arith.addf %373, %374 : vector<8x32xf32>
    %376 = math.tanh %375 : vector<8x32xf32>
    %377 = arith.mulf %372, %376 : vector<8x32xf32>
    %378 = arith.truncf %377 : vector<8x32xf32> to vector<8x32xbf16>
    %c0_82 = arith.constant 0 : index
    %c0_83 = arith.constant 0 : index
    %379 = vector.load %arg7[%c0_82, %c0_83] : memref<32x16xbf16, #tpu.memory_space<vmem>>, vector<32x16xbf16>
    %cst_84 = arith.constant dense<0.000000e+00> : vector<8x16xf32>
    %380 = tpu.matmul %378, %379, %cst_84 {dimension_numbers = #tpu.dot_dimension_numbers<[1], [0], [0], [1], [0, 0, 1, 1], [], []>} : vector<8x32xbf16>, vector<32x16xbf16>, vector<8x16xf32> -> vector<8x16xf32>
    %c0_85 = arith.constant 0 : index
    %c0_86 = arith.constant 0 : index
    %381 = vector.load %arg8[%c0_85, %c0_86] : memref<1x16xf32, #tpu.memory_space<vmem>>, vector<1x16xf32>
    %382 = vector.broadcast %381 : vector<1x16xf32> to vector<8x16xf32>
    %383 = arith.addf %380, %382 : vector<8x16xf32>
    %c0_87 = arith.constant 0 : index
    %c0_88 = arith.constant 0 : index
    %384 = vector.load %arg9[%c0_87, %c0_88] : memref<8x16xf32, #tpu.memory_space<vmem>>, vector<8x16xf32>
    tpu.vector_store %arg9[%c0_87, %c0_88], %383 {strides = array<i32>} : memref<8x16xf32, #tpu.memory_space<vmem>>, vector<8x16xf32>,
    return
  }
}

</mosaic_0001>

<llo_original>
// kernel: tpu_custom_call.1
$region0: #{tpu_custom_call.1}
  #allocation0 [shape = 'u32[]', space=smem, size = 0x4, offset = 0x4, fixed_abs, tag = 'smem constant byte address 0x4 - core index']
  #allocation1 [shape = 'u32[144,128]{1,0:T(1,128)}', space=vmem, size = 0x12000, scoped, tag = 'internal scratch']
  %s0 = inlined_call_operand.vmem [shape: bf16[64,16], index: 0, kind: input, shape index: {}]
  %s1 = inlined_call_operand.vmem [shape: bf16[16,128], index: 1, kind: input, shape index: {}]
  %s2 = inlined_call_operand.vmem [shape: bf16[32,128], index: 2, kind: input, shape index: {}]
  %s3 = inlined_call_operand.vmem [shape: f32[1,128], index: 3, kind: input, shape index: {}]
  %s4 = inlined_call_operand.vmem [shape: bf16[32,128], index: 4, kind: input, shape index: {}]
  %s5 = inlined_call_operand.vmem [shape: bf16[32,128], index: 5, kind: input, shape index: {}]
  %s6 = inlined_call_operand.vmem [shape: f32[1,128], index: 6, kind: input, shape index: {}]
  %s7 = inlined_call_operand.vmem [shape: bf16[32,16], index: 7, kind: input, shape index: {}]
  %s8 = inlined_call_operand.vmem [shape: f32[1,16], index: 8, kind: input, shape index: {}]
  %s9 = inlined_call_operand.hbm [shape: f32[8,16], index: 9, kind: output, shape index: {}]
  %s10 = sld [smem:[#allocation0]]
  $region46: #{tpu_custom_call.1} parent=0
    _
  %s12 = ssub.s32 1, %s10
  %s13 = scalar_select 0, %s12, %s10
  $region1: #{tpu_custom_call.1} parent=0
    #allocation2 [shape = 'u8[4096]{0}', space=vmem, size = 0x1000, scoped, tag = 'output window, operand 0, single buffered']
    #allocation3 [shape = 's32[1]{0}', space=sflag, size = 0x4, scoped, tag = 'scoped memory for tpu_custom_call.1']
    %14 = vsyncpa [#allocation3], 0
    // Predicated region
    $region2: #{tpu_custom_call.1} parent=1 // pred_check
      _
    $region3: #{tpu_custom_call.1} parent=1 // pred_check_branch
      %16 = sbr.rel (0) target = $region5
    $region4: #{tpu_custom_call.1} parent=1 // pred_region
      _
    $region5: #{tpu_custom_call.1} parent=1 // pred_fallthru
      _
    // Predicated region
    $region6: #{tpu_custom_call.1} parent=1 // pred_check
      _
    $region7: #{tpu_custom_call.1} parent=1 // pred_check_branch
      %18 = sbr.rel (0) target = $region9
    $region8: #{tpu_custom_call.1} parent=1 // pred_region
      _
    $region9: #{tpu_custom_call.1} parent=1 // pred_fallthru
      _
    // Predicated region
    $region10: #{tpu_custom_call.1} parent=1 // pred_check
      _
    $region11: #{tpu_custom_call.1} parent=1 // pred_check_branch
      %20 = sbr.rel (0) target = $region13
    $region12: #{tpu_custom_call.1} parent=1 // pred_region
      _
    $region13: #{tpu_custom_call.1} parent=1 // pred_fallthru
      _
    // Predicated region
    $region14: #{tpu_custom_call.1} parent=1 // pred_check
      _
    $region15: #{tpu_custom_call.1} parent=1 // pred_check_branch
      %22 = sbr.rel (0) target = $region17
    $region16: #{tpu_custom_call.1} parent=1 // pred_region
      _
    $region17: #{tpu_custom_call.1} parent=1 // pred_fallthru
      _
    // Predicated region
    $region18: #{tpu_custom_call.1} parent=1 // pred_check
      _
    $region19: #{tpu_custom_call.1} parent=1 // pred_check_branch
      %24 = sbr.rel (0) target = $region21
    $region20: #{tpu_custom_call.1} parent=1 // pred_region
      _
    $region21: #{tpu_custom_call.1} parent=1 // pred_fallthru
      _
    // Predicated region
    $region22: #{tpu_custom_call.1} parent=1 // pred_check
      _
    $region23: #{tpu_custom_call.1} parent=1 // pred_check_branch
      %26 = sbr.rel (0) target = $region25
    $region24: #{tpu_custom_call.1} parent=1 // pred_region
      _
    $region25: #{tpu_custom_call.1} parent=1 // pred_fallthru
      _
    // Predicated region
    $region26: #{tpu_custom_call.1} parent=1 // pred_check
      _
    $region27: #{tpu_custom_call.1} parent=1 // pred_check_branch
      %28 = sbr.rel (0) target = $region29
    $region28: #{tpu_custom_call.1} parent=1 // pred_region
      _
    $region29: #{tpu_custom_call.1} parent=1 // pred_fallthru
      _
    // Predicated region
    $region30: #{tpu_custom_call.1} parent=1 // pred_check
      _
    $region31: #{tpu_custom_call.1} parent=1 // pred_check_branch
      %30 = sbr.rel (0) target = $region33
    $region32: #{tpu_custom_call.1} parent=1 // pred_region
      _
    $region33: #{tpu_custom_call.1} parent=1 // pred_fallthru
      _
    // Predicated region
    $region34: #{tpu_custom_call.1} parent=1 // pred_check
      _
    $region35: #{tpu_custom_call.1} parent=1 // pred_check_branch
      %32 = sbr.rel (0) target = $region37
    $region36: #{tpu_custom_call.1} parent=1 // pred_region
      _
    $region37: #{tpu_custom_call.1} parent=1 // pred_fallthru
      _
    %v34 = vld [vmem:[%s0] sm:$0xf]
    %v35 = vld [vmem:[%s0 + $0x4] sm:$0xf]
    %v36 = vld [vmem:[%s0 + $0x8] sm:$0xf]
    %v37 = vld [vmem:[%s0 + $0xc] sm:$0xf]
    %v38 = vld [vmem:[%s0 + $0x10] sm:$0xf]
    %v39 = vld [vmem:[%s0 + $0x14] sm:$0xf]
    %v40 = vld [vmem:[%s0 + $0x18] sm:$0xf]
    %v41 = vld [vmem:[%s0 + $0x1c] sm:$0xf]
    %v42 = vld [vmem:[%s1] sm:$0xf]
    %v43 = vld [vmem:[%s1 + $0x4] sm:$0xf]
    %v44 = vld [vmem:[%s2] sm:$0xf]
    %v45 = vld [vmem:[%s2 + $0x4] sm:$0xf]
    %v46 = vld [vmem:[%s2 + $0x8] sm:$0xf]
    %v47 = vld [vmem:[%s2 + $0xc] sm:$0xf]
    %v48 = vld [vmem:[%s3] sm:$0x1]
    %v50 = vlaneseq
    %v51 = vshrl.u32 %v50, 7
    %v52 = vsub.s32 0, %v51
    %v53 = vrot.slane %v48, %v52
    %v63 = vunpack.c.l.b16 %v34
    %v64 = vunpack.c.l.b16 %v35
    %v65 = vunpack.c.l.b16 %v36
    %v66 = vunpack.c.l.b16 %v37
    %v67 = vunpack.c.l.b16 %v38
    %v68 = vunpack.c.l.b16 %v39
    %v69 = vunpack.c.l.b16 %v40
    %v70 = vunpack.c.l.b16 %v41
    %v71 = vpack.c.b16 %v64, %v63
    %v72 = vpack.c.b16 %v66, %v65
    %v73 = vpack.c.b16 %v68, %v67
    %v74 = vpack.c.b16 %v70, %v69
    %v77 = vunpack.c.l.b16 %v42
    %v78 = vunpack.c.l.b16 %v43
    %v79 = vpack.c.b16 %v78, %v77
    %vm81 = vcmask 130048
    %v83 = vsel %vm81, %v71, 0
    %v86 = vsel %vm81, %v72, 0
    %v89 = vsel %vm81, %v73, 0
    %v92 = vsel %vm81, %v74, 0
    %94 = vmatprep.subr.bf16.mxu0 0
    %95 = vmatpush1.bf16.msra.mxu0 0
    %96 = vmatprep.subr.bf16.mxu0 0
    %97 = vmatpush1.bf16.msra.mxu0 0
    %98 = vmatprep.subr.bf16.mxu0 0
    %99 = vmatpush1.bf16.msra.mxu0 0
    %100 = vmatprep.subr.bf16.mxu0 0
    %101 = vmatpush1.bf16.msra.mxu0 0
    %102 = vmatprep.subr.bf16.mxu0 0
    %103 = vmatpush1.bf16.msra.mxu0 0
    %104 = vmatprep.subr.bf16.mxu0 0
    %105 = vmatpush1.bf16.msra.mxu0 0
    %106 = vmatprep.subr.bf16.mxu0 0
    %107 = vmatpush1.bf16.msra.mxu0 0
    %108 = vmatprep.subr.bf16.mxu0 0
    %109 = vmatpush1.bf16.msra.mxu0 %v79
    %110 = vmatprep.subr.bf16.mxu0 0
    %111 = vmatpush2.bf16.msra.mxu0 0
    %112 = vmatprep.subr.bf16.mxu0 0
    %113 = vmatpush2.bf16.msra.mxu0 0
    %114 = vmatprep.subr.bf16.mxu0 0
    %115 = vmatpush2.bf16.msra.mxu0 0
    %116 = vmatprep.subr.bf16.mxu0 0
    %117 = vmatpush2.bf16.msra.mxu0 0
    %118 = vmatprep.subr.bf16.mxu0 0
    %119 = vmatpush2.bf16.msra.mxu0 0
    %120 = vmatprep.subr.bf16.mxu0 0
    %121 = vmatpush2.bf16.msra.mxu0 0
    %122 = vmatprep.subr.bf16.mxu0 0
    %123 = vmatpush2.bf16.msra.mxu0 0
    %124 = vmatprep.subr.bf16.mxu0 0
    %125 = vmatpush2.bf16.msra.mxu0 0
    %126 = vmatprep.mubr.bf16.mxu0 0
    %127 = vmatmul.mubr.bf16.gmra.mxu0 %v83
    %v128 = vpop.f32.mrf.mxu0
    %v129 = vadd.f32 %v53, %v128
    %v130 = vpop.f32.mrf.mxu0
    %v131 = vpop.f32.mrf.mxu0
    %v132 = vadd.f32 %v53, %v131
    %v133 = vpop.f32.mrf.mxu0
    %134 = vmatprep.mubr.bf16.mxu0 0
    %135 = vmatmul.mubr.bf16.gmra.mxu0 %v86
    %v136 = vpop.f32.mrf.mxu0
    %v137 = vadd.f32 %v53, %v136
    %v138 = vpop.f32.mrf.mxu0
    %v139 = vpop.f32.mrf.mxu0
    %v140 = vadd.f32 %v53, %v139
    %v141 = vpop.f32.mrf.mxu0
    %142 = vmatprep.mubr.bf16.mxu0 0
    %143 = vmatmul.mubr.bf16.gmra.mxu0 %v89
    %v144 = vpop.f32.mrf.mxu0
    %v145 = vadd.f32 %v53, %v144
    %v146 = vpop.f32.mrf.mxu0
    %v147 = vpop.f32.mrf.mxu0
    %v148 = vadd.f32 %v53, %v147
    %v149 = vpop.f32.mrf.mxu0
    %150 = vmatprep.mubr.bf16.mxu0 0
    %151 = vmatmul.mubr.bf16.gmra.mxu0 %v92
    %v152 = vpop.f32.mrf.mxu0
    %v153 = vadd.f32 %v53, %v152
    %v154 = vpop.f32.mrf.mxu0
    %v155 = vpop.f32.mrf.mxu0
    %v156 = vadd.f32 %v53, %v155
    %v157 = vpop.f32.mrf.mxu0
    %158 = vdwg.mxu0
    %v163 = vunpack.c.l.b16 %v44
    %v164 = vunpack.c.l.b16 %v45
    %v165 = vunpack.c.l.b16 %v46
    %v166 = vunpack.c.l.b16 %v47
    %v167 = vpack.c.b16 %v164, %v163
    %v168 = vpack.c.b16 %v166, %v165
    %vm171 = vcmask 261120
    %v173 = vsel %vm171, 0, 0
    %175 = vmatprep.subr.bf16.mxu0 0
    %176 = vmatpush1.bf16.msra.mxu0 0
    %177 = vmatprep.subr.bf16.mxu0 0
    %178 = vmatpush1.bf16.msra.mxu0 0
    %179 = vmatprep.subr.bf16.mxu0 0
    %180 = vmatpush1.bf16.msra.mxu0 0
    %181 = vmatprep.subr.bf16.mxu0 0
    %182 = vmatpush1.bf16.msra.mxu0 0
    %183 = vmatprep.subr.bf16.mxu0 0
    %184 = vmatpush1.bf16.msra.mxu0 0
    %185 = vmatprep.subr.bf16.mxu0 0
    %186 = vmatpush1.bf16.msra.mxu0 0
    %187 = vmatprep.subr.bf16.mxu0 0
    %188 = vmatpush1.bf16.msra.mxu0 %v168
    %189 = vmatprep.subr.bf16.mxu0 0
    %190 = vmatpush1.bf16.msra.mxu0 %v167
    %191 = vmatprep.subr.bf16.mxu0 0
    %192 = vmatpush2.bf16.msra.mxu0 0
    %193 = vmatprep.subr.bf16.mxu0 0
    %194 = vmatpush2.bf16.msra.mxu0 0
    %195 = vmatprep.subr.bf16.mxu0 0
    %196 = vmatpush2.bf16.msra.mxu0 0
    %197 = vmatprep.subr.bf16.mxu0 0
    %198 = vmatpush2.bf16.msra.mxu0 0
    %199 = vmatprep.subr.bf16.mxu0 0
    %200 = vmatpush2.bf16.msra.mxu0 0
    %201 = vmatprep.subr.bf16.mxu0 0
    %202 = vmatpush2.bf16.msra.mxu0 0
    %203 = vmatprep.subr.bf16.mxu0 0
    %204 = vmatpush2.bf16.msra.mxu0 0
    %205 = vmatprep.subr.bf16.mxu0 0
    %206 = vmatpush2.bf16.msra.mxu0 0
    %207 = vmatprep.mubr.bf16.mxu0 0
    %208 = vmatmul.mubr.bf16.gmra.mxu0 %v173
    %v209 = vpop.f32.mrf.mxu0
    %v210 = vadd.f32 0.0, %v209
    %v211 = vpop.f32.mrf.mxu0
    %v212 = vpop.f32.mrf.mxu0
    %v213 = vpop.f32.mrf.mxu0
    %214 = vdwg.mxu0
    %v215 = vadd.f32 %v129, %v210
    %v216 = vxor.u32 %v215, 2147483648
    %v217 = vmul.f32 %v216, 1.442695
    %v218 = vpow.pop %v217
    %v219 = vadd.f32 %v218, 1.0
    %v220 = vrcp.pop %v219
    %v221 = vmul.f32 1.0, %v220
    %v222 = vmul.f32 %v221, 2.0
    %v223 = vsub.f32 %v222, 1.0
    %v224 = vmul.f32 %v221, 0.0
    %226 = vrot.lane.b32.xlu0 %v223, 64
    %v227 = vpop.permute.xlu0 %226
    %v229 = vmul.f32 %v221, %v227
    %231 = vrot.lane.b32.xlu0 %v229, 32
    %v232 = vpop.permute.xlu0 %231
    %v234 = vadd.f32 %v224, %v232
    %v235 = vtanh.pop %v234
    %237 = vrot.lane.b32.xlu0 %v235, 64
    %v238 = vpop.permute.xlu0 %237
    %v240 = vmul.f32 %v221, %v238
    %v241 = vpack.c.bf16 %v240, %v240
    %243 = vrot.lane.b32.xlu0 %v241, 32
    %v244 = vpop.permute.xlu0 %243
    %v246 = vsel %vm171, %v244, 0
    %248 = vmatprep.subr.bf16.mxu0 0
    %249 = vmatpush1.bf16.msra.mxu0 0
    %250 = vmatprep.subr.bf16.mxu0 0
    %251 = vmatpush1.bf16.msra.mxu0 0
    %252 = vmatprep.subr.bf16.mxu0 0
    %253 = vmatpush1.bf16.msra.mxu0 0
    %254 = vmatprep.subr.bf16.mxu0 0
    %255 = vmatpush1.bf16.msra.mxu0 0
    %256 = vmatprep.subr.bf16.mxu0 0
    %257 = vmatpush1.bf16.msra.mxu0 0
    %258 = vmatprep.subr.bf16.mxu0 0
    %259 = vmatpush1.bf16.msra.mxu0 0
    %260 = vmatprep.subr.bf16.mxu0 0
    %261 = vmatpush1.bf16.msra.mxu0 %v168
    %262 = vmatprep.subr.bf16.mxu0 0
    %263 = vmatpush1.bf16.msra.mxu0 %v167
    %264 = vmatprep.subr.bf16.mxu0 0
    %265 = vmatpush2.bf16.msra.mxu0 0
    %266 = vmatprep.subr.bf16.mxu0 0
    %267 = vmatpush2.bf16.msra.mxu0 0
    %268 = vmatprep.subr.bf16.mxu0 0
    %269 = vmatpush2.bf16.msra.mxu0 0
    %270 = vmatprep.subr.bf16.mxu0 0
    %271 = vmatpush2.bf16.msra.mxu0 0
    %272 = vmatprep.subr.bf16.mxu0 0
    %273 = vmatpush2.bf16.msra.mxu0 0
    %274 = vmatprep.subr.bf16.mxu0 0
    %275 = vmatpush2.bf16.msra.mxu0 0
    %276 = vmatprep.subr.bf16.mxu0 0
    %277 = vmatpush2.bf16.msra.mxu0 0
    %278 = vmatprep.subr.bf16.mxu0 0
    %279 = vmatpush2.bf16.msra.mxu0 0
    %280 = vmatprep.mubr.bf16.mxu0 0
    %281 = vmatmul.mubr.bf16.gmra.mxu0 %v246
    %v282 = vpop.f32.mrf.mxu0
    %v283 = vadd.f32 0.0, %v282
    %v284 = vpop.f32.mrf.mxu0
    %v285 = vpop.f32.mrf.mxu0
    %v286 = vpop.f32.mrf.mxu0
    %287 = vdwg.mxu0
    %v288 = vadd.f32 %v132, %v283
    %v289 = vxor.u32 %v288, 2147483648
    %v290 = vmul.f32 %v289, 1.442695
    %v291 = vpow.pop %v290
    %v292 = vadd.f32 %v291, 1.0
    %v293 = vrcp.pop %v292
    %v294 = vmul.f32 1.0, %v293
    %v295 = vmul.f32 %v294, 2.0
    %v296 = vsub.f32 %v295, 1.0
    %v297 = vmul.f32 %v294, %v234
    %299 = vrot.lane.b32.xlu0 %v296, 64
    %v300 = vpop.permute.xlu0 %299
    %v302 = vmul.f32 %v294, %v300
    %304 = vrot.lane.b32.xlu0 %v302, 32
    %v305 = vpop.permute.xlu0 %304
    %v307 = vadd.f32 %v297, %v305
    %v308 = vtanh.pop %v307
    %310 = vrot.lane.b32.xlu0 %v308, 64
    %v311 = vpop.permute.xlu0 %310
    %v313 = vmul.f32 %v294, %v311
    %v314 = vpack.c.bf16 %v313, %v313
    %316 = vrot.lane.b32.xlu0 %v314, 32
    %v317 = vpop.permute.xlu0 %316
    %v319 = vsel %vm171, %v317, 0
    %321 = vmatprep.subr.bf16.mxu0 0
    %322 = vmatpush1.bf16.msra.mxu0 0
    %323 = vmatprep.subr.bf16.mxu0 0
    %324 = vmatpush1.bf16.msra.mxu0 0
    %325 = vmatprep.subr.bf16.mxu0 0
    %326 = vmatpush1.bf16.msra.mxu0 0
    %327 = vmatprep.subr.bf16.mxu0 0
    %328 = vmatpush1.bf16.msra.mxu0 0
    %329 = vmatprep.subr.bf16.mxu0 0
    %330 = vmatpush1.bf16.msra.mxu0 0
    %331 = vmatprep.subr.bf16.mxu0 0
    %332 = vmatpush1.bf16.msra.mxu0 0
    %333 = vmatprep.subr.bf16.mxu0 0
    %334 = vmatpush1.bf16.msra.mxu0 %v168
    %335 = vmatprep.subr.bf16.mxu0 0
    %336 = vmatpush1.bf16.msra.mxu0 %v167
    %337 = vmatprep.subr.bf16.mxu0 0
    %338 = vmatpush2.bf16.msra.mxu0 0
    %339 = vmatprep.subr.bf16.mxu0 0
    %340 = vmatpush2.bf16.msra.mxu0 0
    %341 = vmatprep.subr.bf16.mxu0 0
    %342 = vmatpush2.bf16.msra.mxu0 0
    %343 = vmatprep.subr.bf16.mxu0 0
    %344 = vmatpush2.bf16.msra.mxu0 0
    %345 = vmatprep.subr.bf16.mxu0 0
    %346 = vmatpush2.bf16.msra.mxu0 0
    %347 = vmatprep.subr.bf16.mxu0 0
    %348 = vmatpush2.bf16.msra.mxu0 0
    %349 = vmatprep.subr.bf16.mxu0 0
    %350 = vmatpush2.bf16.msra.mxu0 0
    %351 = vmatprep.subr.bf16.mxu0 0
    %352 = vmatpush2.bf16.msra.mxu0 0
    %353 = vmatprep.mubr.bf16.mxu0 0
    %354 = vmatmul.mubr.bf16.gmra.mxu0 %v319
    %v355 = vpop.f32.mrf.mxu0
    %v356 = vadd.f32 0.0, %v355
    %v357 = vpop.f32.mrf.mxu0
    %v358 = vpop.f32.mrf.mxu0
    %v359 = vpop.f32.mrf.mxu0
    %360 = vdwg.mxu0
    %v361 = vadd.f32 %v137, %v356
    %v362 = vxor.u32 %v361, 2147483648
    %v363 = vmul.f32 %v362, 1.442695
    %v364 = vpow.pop %v363
    %v365 = vadd.f32 %v364, 1.0
    %v366 = vrcp.pop %v365
    %v367 = vmul.f32 1.0, %v366
    %v368 = vmul.f32 %v367, 2.0
    %v369 = vsub.f32 %v368, 1.0
    %v370 = vmul.f32 %v367, %v307
    %372 = vrot.lane.b32.xlu0 %v369, 64
    %v373 = vpop.permute.xlu0 %372
    %v375 = vmul.f32 %v367, %v373
    %377 = vrot.lane.b32.xlu0 %v375, 32
    %v378 = vpop.permute.xlu0 %377
    %v380 = vadd.f32 %v370, %v378
    %v381 = vtanh.pop %v380
    %383 = vrot.lane.b32.xlu0 %v381, 64
    %v384 = vpop.permute.xlu0 %383
    %v386 = vmul.f32 %v367, %v384
    %v387 = vpack.c.bf16 %v386, %v386
    %389 = vrot.lane.b32.xlu0 %v387, 32
    %v390 = vpop.permute.xlu0 %389
    %v392 = vsel %vm171, %v390, 0
    %394 = vmatprep.subr.bf16.mxu0 0
    %395 = vmatpush1.bf16.msra.mxu0 0
    %396 = vmatprep.subr.bf16.mxu0 0
    %397 = vmatpush1.bf16.msra.mxu0 0
    %398 = vmatprep.subr.bf16.mxu0 0
    %399 = vmatpush1.bf16.msra.mxu0 0
    %400 = vmatprep.subr.bf16.mxu0 0
    %401 = vmatpush1.bf16.msra.mxu0 0
    %402 = vmatprep.subr.bf16.mxu0 0
    %403 = vmatpush1.bf16.msra.mxu0 0
    %404 = vmatprep.subr.bf16.mxu0 0
    %405 = vmatpush1.bf16.msra.mxu0 0
    %406 = vmatprep.subr.bf16.mxu0 0
    %407 = vmatpush1.bf16.msra.mxu0 %v168
    %408 = vmatprep.subr.bf16.mxu0 0
    %409 = vmatpush1.bf16.msra.mxu0 %v167
    %410 = vmatprep.subr.bf16.mxu0 0
    %411 = vmatpush2.bf16.msra.mxu0 0
    %412 = vmatprep.subr.bf16.mxu0 0
    %413 = vmatpush2.bf16.msra.mxu0 0
    %414 = vmatprep.subr.bf16.mxu0 0
    %415 = vmatpush2.bf16.msra.mxu0 0
    %416 = vmatprep.subr.bf16.mxu0 0
    %417 = vmatpush2.bf16.msra.mxu0 0
    %418 = vmatprep.subr.bf16.mxu0 0
    %419 = vmatpush2.bf16.msra.mxu0 0
    %420 = vmatprep.subr.bf16.mxu0 0
    %421 = vmatpush2.bf16.msra.mxu0 0
    %422 = vmatprep.subr.bf16.mxu0 0
    %423 = vmatpush2.bf16.msra.mxu0 0
    %424 = vmatprep.subr.bf16.mxu0 0
    %425 = vmatpush2.bf16.msra.mxu0 0
    %426 = vmatprep.mubr.bf16.mxu0 0
    %427 = vmatmul.mubr.bf16.gmra.mxu0 %v392
    %v428 = vpop.f32.mrf.mxu0
    %v429 = vadd.f32 0.0, %v428
    %v430 = vpop.f32.mrf.mxu0
    %v431 = vpop.f32.mrf.mxu0
    %v432 = vpop.f32.mrf.mxu0
    %433 = vdwg.mxu0
    %v434 = vadd.f32 %v140, %v429
    %v435 = vxor.u32 %v434, 2147483648
    %v436 = vmul.f32 %v435, 1.442695
    %v437 = vpow.pop %v436
    %v438 = vadd.f32 %v437, 1.0
    %v439 = vrcp.pop %v438
    %v440 = vmul.f32 1.0, %v439
    %v441 = vmul.f32 %v440, 2.0
    %v442 = vsub.f32 %v441, 1.0
    %v443 = vmul.f32 %v440, %v380
    %445 = vrot.lane.b32.xlu0 %v442, 64
    %v446 = vpop.permute.xlu0 %445
    %v448 = vmul.f32 %v440, %v446
    %450 = vrot.lane.b32.xlu0 %v448, 32
    %v451 = vpop.permute.xlu0 %450
    %v453 = vadd.f32 %v443, %v451
    %v454 = vtanh.pop %v453
    %456 = vrot.lane.b32.xlu0 %v454, 64
    %v457 = vpop.permute.xlu0 %456
    %v459 = vmul.f32 %v440, %v457
    %v460 = vpack.c.bf16 %v459, %v459
    %462 = vrot.lane.b32.xlu0 %v460, 32
    %v463 = vpop.permute.xlu0 %462
    %v465 = vsel %vm171, %v463, 0
    %467 = vmatprep.subr.bf16.mxu0 0
    %468 = vmatpush1.bf16.msra.mxu0 0
    %469 = vmatprep.subr.bf16.mxu0 0
    %470 = vmatpush1.bf16.msra.mxu0 0
    %471 = vmatprep.subr.bf16.mxu0 0
    %472 = vmatpush1.bf16.msra.mxu0 0
    %473 = vmatprep.subr.bf16.mxu0 0
    %474 = vmatpush1.bf16.msra.mxu0 0
    %475 = vmatprep.subr.bf16.mxu0 0
    %476 = vmatpush1.bf16.msra.mxu0 0
    %477 = vmatprep.subr.bf16.mxu0 0
    %478 = vmatpush1.bf16.msra.mxu0 0
    %479 = vmatprep.subr.bf16.mxu0 0
    %480 = vmatpush1.bf16.msra.mxu0 %v168
    %481 = vmatprep.subr.bf16.mxu0 0
    %482 = vmatpush1.bf16.msra.mxu0 %v167
    %483 = vmatprep.subr.bf16.mxu0 0
    %484 = vmatpush2.bf16.msra.mxu0 0
    %485 = vmatprep.subr.bf16.mxu0 0
    %486 = vmatpush2.bf16.msra.mxu0 0
    %487 = vmatprep.subr.bf16.mxu0 0
    %488 = vmatpush2.bf16.msra.mxu0 0
    %489 = vmatprep.subr.bf16.mxu0 0
    %490 = vmatpush2.bf16.msra.mxu0 0
    %491 = vmatprep.subr.bf16.mxu0 0
    %492 = vmatpush2.bf16.msra.mxu0 0
    %493 = vmatprep.subr.bf16.mxu0 0
    %494 = vmatpush2.bf16.msra.mxu0 0
    %495 = vmatprep.subr.bf16.mxu0 0
    %496 = vmatpush2.bf16.msra.mxu0 0
    %497 = vmatprep.subr.bf16.mxu0 0
    %498 = vmatpush2.bf16.msra.mxu0 0
    %499 = vmatprep.mubr.bf16.mxu0 0
    %500 = vmatmul.mubr.bf16.gmra.mxu0 %v465
    %v501 = vpop.f32.mrf.mxu0
    %v502 = vadd.f32 0.0, %v501
    %v503 = vpop.f32.mrf.mxu0
    %v504 = vpop.f32.mrf.mxu0
    %v505 = vpop.f32.mrf.mxu0
    %506 = vdwg.mxu0
    %v507 = vadd.f32 %v145, %v502
    %v508 = vxor.u32 %v507, 2147483648
    %v509 = vmul.f32 %v508, 1.442695
    %v510 = vpow.pop %v509
    %v511 = vadd.f32 %v510, 1.0
    %v512 = vrcp.pop %v511
    %v513 = vmul.f32 1.0, %v512
    %v514 = vmul.f32 %v513, 2.0
    %v515 = vsub.f32 %v514, 1.0
    %v516 = vmul.f32 %v513, %v453
    %518 = vrot.lane.b32.xlu0 %v515, 64
    %v519 = vpop.permute.xlu0 %518
    %v521 = vmul.f32 %v513, %v519
    %523 = vrot.lane.b32.xlu0 %v521, 32
    %v524 = vpop.permute.xlu0 %523
    %v526 = vadd.f32 %v516, %v524
    %v527 = vtanh.pop %v526
    %529 = vrot.lane.b32.xlu0 %v527, 64
    %v530 = vpop.permute.xlu0 %529
    %v532 = vmul.f32 %v513, %v530
    %v533 = vpack.c.bf16 %v532, %v532
    %535 = vrot.lane.b32.xlu0 %v533, 32
    %v536 = vpop.permute.xlu0 %535
    %v538 = vsel %vm171, %v536, 0
    %540 = vmatprep.subr.bf16.mxu0 0
    %541 = vmatpush1.bf16.msra.mxu0 0
    %542 = vmatprep.subr.bf16.mxu0 0
    %543 = vmatpush1.bf16.msra.mxu0 0
    %544 = vmatprep.subr.bf16.mxu0 0
    %545 = vmatpush1.bf16.msra.mxu0 0
    %546 = vmatprep.subr.bf16.mxu0 0
    %547 = vmatpush1.bf16.msra.mxu0 0
    %548 = vmatprep.subr.bf16.mxu0 0
    %549 = vmatpush1.bf16.msra.mxu0 0
    %550 = vmatprep.subr.bf16.mxu0 0
    %551 = vmatpush1.bf16.msra.mxu0 0
    %552 = vmatprep.subr.bf16.mxu0 0
    %553 = vmatpush1.bf16.msra.mxu0 %v168
    %554 = vmatprep.subr.bf16.mxu0 0
    %555 = vmatpush1.bf16.msra.mxu0 %v167
    %556 = vmatprep.subr.bf16.mxu0 0
    %557 = vmatpush2.bf16.msra.mxu0 0
    %558 = vmatprep.subr.bf16.mxu0 0
    %559 = vmatpush2.bf16.msra.mxu0 0
    %560 = vmatprep.subr.bf16.mxu0 0
    %561 = vmatpush2.bf16.msra.mxu0 0
    %562 = vmatprep.subr.bf16.mxu0 0
    %563 = vmatpush2.bf16.msra.mxu0 0
    %564 = vmatprep.subr.bf16.mxu0 0
    %565 = vmatpush2.bf16.msra.mxu0 0
    %566 = vmatprep.subr.bf16.mxu0 0
    %567 = vmatpush2.bf16.msra.mxu0 0
    %568 = vmatprep.subr.bf16.mxu0 0
    %569 = vmatpush2.bf16.msra.mxu0 0
    %570 = vmatprep.subr.bf16.mxu0 0
    %571 = vmatpush2.bf16.msra.mxu0 0
    %572 = vmatprep.mubr.bf16.mxu0 0
    %573 = vmatmul.mubr.bf16.gmra.mxu0 %v538
    %v574 = vpop.f32.mrf.mxu0
    %v575 = vadd.f32 0.0, %v574
    %v576 = vpop.f32.mrf.mxu0
    %v577 = vpop.f32.mrf.mxu0
    %v578 = vpop.f32.mrf.mxu0
    %579 = vdwg.mxu0
    %v580 = vadd.f32 %v148, %v575
    %v581 = vxor.u32 %v580, 2147483648
    %v582 = vmul.f32 %v581, 1.442695
    %v583 = vpow.pop %v582
    %v584 = vadd.f32 %v583, 1.0
    %v585 = vrcp.pop %v584
    %v586 = vmul.f32 1.0, %v585
    %v587 = vmul.f32 %v586, 2.0
    %v588 = vsub.f32 %v587, 1.0
    %v589 = vmul.f32 %v586, %v526
    %591 = vrot.lane.b32.xlu0 %v588, 64
    %v592 = vpop.permute.xlu0 %591
    %v594 = vmul.f32 %v586, %v592
    %596 = vrot.lane.b32.xlu0 %v594, 32
    %v597 = vpop.permute.xlu0 %596
    %v599 = vadd.f32 %v589, %v597
    %v600 = vtanh.pop %v599
    %602 = vrot.lane.b32.xlu0 %v600, 64
    %v603 = vpop.permute.xlu0 %602
    %v605 = vmul.f32 %v586, %v603
    %v606 = vpack.c.bf16 %v605, %v605
    %608 = vrot.lane.b32.xlu0 %v606, 32
    %v609 = vpop.permute.xlu0 %608
    %v611 = vsel %vm171, %v609, 0
    %613 = vmatprep.subr.bf16.mxu0 0
    %614 = vmatpush1.bf16.msra.mxu0 0
    %615 = vmatprep.subr.bf16.mxu0 0
    %616 = vmatpush1.bf16.msra.mxu0 0
    %617 = vmatprep.subr.bf16.mxu0 0
    %618 = vmatpush1.bf16.msra.mxu0 0
    %619 = vmatprep.subr.bf16.mxu0 0
    %620 = vmatpush1.bf16.msra.mxu0 0
    %621 = vmatprep.subr.bf16.mxu0 0
    %622 = vmatpush1.bf16.msra.mxu0 0
    %623 = vmatprep.subr.bf16.mxu0 0
    %624 = vmatpush1.bf16.msra.mxu0 0
    %625 = vmatprep.subr.bf16.mxu0 0
    %626 = vmatpush1.bf16.msra.mxu0 %v168
    %627 = vmatprep.subr.bf16.mxu0 0
    %628 = vmatpush1.bf16.msra.mxu0 %v167
    %629 = vmatprep.subr.bf16.mxu0 0
    %630 = vmatpush2.bf16.msra.mxu0 0
    %631 = vmatprep.subr.bf16.mxu0 0
    %632 = vmatpush2.bf16.msra.mxu0 0
    %633 = vmatprep.subr.bf16.mxu0 0
    %634 = vmatpush2.bf16.msra.mxu0 0
    %635 = vmatprep.subr.bf16.mxu0 0
    %636 = vmatpush2.bf16.msra.mxu0 0
    %637 = vmatprep.subr.bf16.mxu0 0
    %638 = vmatpush2.bf16.msra.mxu0 0
    %639 = vmatprep.subr.bf16.mxu0 0
    %640 = vmatpush2.bf16.msra.mxu0 0
    %641 = vmatprep.subr.bf16.mxu0 0
    %642 = vmatpush2.bf16.msra.mxu0 0
    %643 = vmatprep.subr.bf16.mxu0 0
    %644 = vmatpush2.bf16.msra.mxu0 0
    %645 = vmatprep.mubr.bf16.mxu0 0
    %646 = vmatmul.mubr.bf16.gmra.mxu0 %v611
    %v647 = vpop.f32.mrf.mxu0
    %v648 = vadd.f32 0.0, %v647
    %v649 = vpop.f32.mrf.mxu0
    %v650 = vpop.f32.mrf.mxu0
    %v651 = vpop.f32.mrf.mxu0
    %652 = vdwg.mxu0
    %v653 = vadd.f32 %v153, %v648
    %v654 = vxor.u32 %v653, 2147483648
    %v655 = vmul.f32 %v654, 1.442695
    %v656 = vpow.pop %v655
    %v657 = vadd.f32 %v656, 1.0
    %v658 = vrcp.pop %v657
    %v659 = vmul.f32 1.0, %v658
    %v660 = vmul.f32 %v659, 2.0
    %v661 = vsub.f32 %v660, 1.0
    %v662 = vmul.f32 %v659, %v599
    %664 = vrot.lane.b32.xlu0 %v661, 64
    %v665 = vpop.permute.xlu0 %664
    %v667 = vmul.f32 %v659, %v665
    %669 = vrot.lane.b32.xlu0 %v667, 32
    %v670 = vpop.permute.xlu0 %669
    %v672 = vadd.f32 %v662, %v670
    %v673 = vtanh.pop %v672
    %675 = vrot.lane.b32.xlu0 %v673, 64
    %v676 = vpop.permute.xlu0 %675
    %v678 = vmul.f32 %v659, %v676
    %v679 = vpack.c.bf16 %v678, %v678
    %681 = vrot.lane.b32.xlu0 %v679, 32
    %v682 = vpop.permute.xlu0 %681
    %v684 = vsel %vm171, %v682, 0
    %686 = vmatprep.subr.bf16.mxu0 0
    %687 = vmatpush1.bf16.msra.mxu0 0
    %688 = vmatprep.subr.bf16.mxu0 0
    %689 = vmatpush1.bf16.msra.mxu0 0
    %690 = vmatprep.subr.bf16.mxu0 0
    %691 = vmatpush1.bf16.msra.mxu0 0
    %692 = vmatprep.subr.bf16.mxu0 0
    %693 = vmatpush1.bf16.msra.mxu0 0
    %694 = vmatprep.subr.bf16.mxu0 0
    %695 = vmatpush1.bf16.msra.mxu0 0
    %696 = vmatprep.subr.bf16.mxu0 0
    %697 = vmatpush1.bf16.msra.mxu0 0
    %698 = vmatprep.subr.bf16.mxu0 0
    %699 = vmatpush1.bf16.msra.mxu0 %v168
    %700 = vmatprep.subr.bf16.mxu0 0
    %701 = vmatpush1.bf16.msra.mxu0 %v167
    %702 = vmatprep.subr.bf16.mxu0 0
    %703 = vmatpush2.bf16.msra.mxu0 0
    %704 = vmatprep.subr.bf16.mxu0 0
    %705 = vmatpush2.bf16.msra.mxu0 0
    %706 = vmatprep.subr.bf16.mxu0 0
    %707 = vmatpush2.bf16.msra.mxu0 0
    %708 = vmatprep.subr.bf16.mxu0 0
    %709 = vmatpush2.bf16.msra.mxu0 0
    %710 = vmatprep.subr.bf16.mxu0 0
    %711 = vmatpush2.bf16.msra.mxu0 0
    %712 = vmatprep.subr.bf16.mxu0 0
    %713 = vmatpush2.bf16.msra.mxu0 0
    %714 = vmatprep.subr.bf16.mxu0 0
    %715 = vmatpush2.bf16.msra.mxu0 0
    %716 = vmatprep.subr.bf16.mxu0 0
    %717 = vmatpush2.bf16.msra.mxu0 0
    %718 = vmatprep.mubr.bf16.mxu0 0
    %719 = vmatmul.mubr.bf16.gmra.mxu0 %v684
    %v720 = vpop.f32.mrf.mxu0
    %v721 = vadd.f32 0.0, %v720
    %v722 = vpop.f32.mrf.mxu0
    %v723 = vpop.f32.mrf.mxu0
    %v724 = vpop.f32.mrf.mxu0
    %725 = vdwg.mxu0
    %v726 = vadd.f32 %v156, %v721
    %v727 = vxor.u32 %v726, 2147483648
    %v728 = vmul.f32 %v727, 1.442695
    %v729 = vpow.pop %v728
    %v730 = vadd.f32 %v729, 1.0
    %v731 = vrcp.pop %v730
    %v732 = vmul.f32 1.0, %v731
    %v733 = vmul.f32 %v732, 2.0
    %v734 = vsub.f32 %v733, 1.0
    %v735 = vmul.f32 %v732, %v672
    %737 = vrot.lane.b32.xlu0 %v734, 64
    %v738 = vpop.permute.xlu0 %737
    %v740 = vmul.f32 %v732, %v738
    %742 = vrot.lane.b32.xlu0 %v740, 32
    %v743 = vpop.permute.xlu0 %742
    %v745 = vadd.f32 %v735, %v743
    %v746 = vtanh.pop %v745
    %748 = vrot.lane.b32.xlu0 %v746, 64
    %v749 = vpop.permute.xlu0 %748
    %v751 = vmul.f32 %v732, %v749
    %v752 = vpack.c.bf16 %v751, %v751
    %v753 = vrot.slane %v314, 4
    %v754 = vrot.slane %v460, 4
    %v755 = vrot.slane %v606, 4
    %v757 = vrot.slane %v752, 4
    %vm758 = vcmask 1043456
    %v761 = vsel %vm758, %v241, %v753
    %v764 = vsel %vm758, %v387, %v754
    %v767 = vsel %vm758, %v533, %v755
    %v770 = vsel %vm758, %v679, %v757
    %v771 = vld [vmem:[%s4] sm:$0xf]
    %v772 = vld [vmem:[%s4 + $0x4] sm:$0xf]
    %v773 = vld [vmem:[%s4 + $0x8] sm:$0xf]
    %v774 = vld [vmem:[%s4 + $0xc] sm:$0xf]
    %v775 = vld [vmem:[%s5] sm:$0xf]
    %v776 = vld [vmem:[%s5 + $0x4] sm:$0xf]
    %v777 = vld [vmem:[%s5 + $0x8] sm:$0xf]
    %v778 = vld [vmem:[%s5 + $0xc] sm:$0xf]
    %v779 = vld [vmem:[%s6] sm:$0x1]
    %v781 = vlaneseq
    %v782 = vshrl.u32 %v781, 7
    %v783 = vsub.s32 0, %v782
    %v784 = vrot.slane %v779, %v783
    %790 = vrot.lane.b32.xlu0 %v761, 32
    %v791 = vpop.permute.xlu0 %790
    %792 = vrot.lane.b32.xlu0 %v764, 32
    %v793 = vpop.permute.xlu0 %792
    %794 = vrot.lane.b32.xlu0 %v767, 32
    %v795 = vpop.permute.xlu0 %794
    %796 = vrot.lane.b32.xlu0 %v770, 32
    %v797 = vpop.permute.xlu0 %796
    %v802 = vunpack.c.l.b16 %v771
    %v803 = vunpack.c.l.b16 %v772
    %v804 = vunpack.c.l.b16 %v773
    %v805 = vunpack.c.l.b16 %v774
    %v806 = vpack.c.b16 %v803, %v802
    %v807 = vpack.c.b16 %v805, %v804
    %v811 = vsel %vm171, %v791, 0
    %v814 = vsel %vm171, %v793, 0
    %v817 = vsel %vm171, %v795, 0
    %v820 = vsel %vm171, %v797, 0
    %822 = vmatprep.subr.bf16.mxu0 0
    %823 = vmatpush1.bf16.msra.mxu0 0
    %824 = vmatprep.subr.bf16.mxu0 0
    %825 = vmatpush1.bf16.msra.mxu0 0
    %826 = vmatprep.subr.bf16.mxu0 0
    %827 = vmatpush1.bf16.msra.mxu0 0
    %828 = vmatprep.subr.bf16.mxu0 0
    %829 = vmatpush1.bf16.msra.mxu0 0
    %830 = vmatprep.subr.bf16.mxu0 0
    %831 = vmatpush1.bf16.msra.mxu0 0
    %832 = vmatprep.subr.bf16.mxu0 0
    %833 = vmatpush1.bf16.msra.mxu0 0
    %834 = vmatprep.subr.bf16.mxu0 0
    %835 = vmatpush1.bf16.msra.mxu0 %v807
    %836 = vmatprep.subr.bf16.mxu0 0
    %837 = vmatpush1.bf16.msra.mxu0 %v806
    %838 = vmatprep.subr.bf16.mxu0 0
    %839 = vmatpush2.bf16.msra.mxu0 0
    %840 = vmatprep.subr.bf16.mxu0 0
    %841 = vmatpush2.bf16.msra.mxu0 0
    %842 = vmatprep.subr.bf16.mxu0 0
    %843 = vmatpush2.bf16.msra.mxu0 0
    %844 = vmatprep.subr.bf16.mxu0 0
    %845 = vmatpush2.bf16.msra.mxu0 0
    %846 = vmatprep.subr.bf16.mxu0 0
    %847 = vmatpush2.bf16.msra.mxu0 0
    %848 = vmatprep.subr.bf16.mxu0 0
    %849 = vmatpush2.bf16.msra.mxu0 0
    %850 = vmatprep.subr.bf16.mxu0 0
    %851 = vmatpush2.bf16.msra.mxu0 0
    %852 = vmatprep.subr.bf16.mxu0 0
    %853 = vmatpush2.bf16.msra.mxu0 0
    %854 = vmatprep.mubr.bf16.mxu0 0
    %855 = vmatmul.mubr.bf16.gmra.mxu0 %v811
    %v856 = vpop.f32.mrf.mxu0
    %v857 = vadd.f32 %v784, %v856
    %v858 = vpop.f32.mrf.mxu0
    %v859 = vpop.f32.mrf.mxu0
    %v860 = vadd.f32 %v784, %v859
    %v861 = vpop.f32.mrf.mxu0
    %862 = vmatprep.mubr.bf16.mxu0 0
    %863 = vmatmul.mubr.bf16.gmra.mxu0 %v814
    %v864 = vpop.f32.mrf.mxu0
    %v865 = vadd.f32 %v784, %v864
    %v866 = vpop.f32.mrf.mxu0
    %v867 = vpop.f32.mrf.mxu0
    %v868 = vadd.f32 %v784, %v867
    %v869 = vpop.f32.mrf.mxu0
    %870 = vmatprep.mubr.bf16.mxu0 0
    %871 = vmatmul.mubr.bf16.gmra.mxu0 %v817
    %v872 = vpop.f32.mrf.mxu0
    %v873 = vadd.f32 %v784, %v872
    %v874 = vpop.f32.mrf.mxu0
    %v875 = vpop.f32.mrf.mxu0
    %v876 = vadd.f32 %v784, %v875
    %v877 = vpop.f32.mrf.mxu0
    %878 = vmatprep.mubr.bf16.mxu0 0
    %879 = vmatmul.mubr.bf16.gmra.mxu0 %v820
    %v880 = vpop.f32.mrf.mxu0
    %v881 = vadd.f32 %v784, %v880
    %v882 = vpop.f32.mrf.mxu0
    %v883 = vpop.f32.mrf.mxu0
    %v884 = vadd.f32 %v784, %v883
    %v885 = vpop.f32.mrf.mxu0
    %886 = vdwg.mxu0
    %v891 = vunpack.c.l.b16 %v775
    %v892 = vunpack.c.l.b16 %v776
    %v893 = vunpack.c.l.b16 %v777
    %v894 = vunpack.c.l.b16 %v778
    %v895 = vpack.c.b16 %v892, %v891
    %v896 = vpack.c.b16 %v894, %v893
    %899 = vmatprep.subr.bf16.mxu0 0
    %900 = vmatpush1.bf16.msra.mxu0 0
    %901 = vmatprep.subr.bf16.mxu0 0
    %902 = vmatpush1.bf16.msra.mxu0 0
    %903 = vmatprep.subr.bf16.mxu0 0
    %904 = vmatpush1.bf16.msra.mxu0 0
    %905 = vmatprep.subr.bf16.mxu0 0
    %906 = vmatpush1.bf16.msra.mxu0 0
    %907 = vmatprep.subr.bf16.mxu0 0
    %908 = vmatpush1.bf16.msra.mxu0 0
    %909 = vmatprep.subr.bf16.mxu0 0
    %910 = vmatpush1.bf16.msra.mxu0 0
    %911 = vmatprep.subr.bf16.mxu0 0
    %912 = vmatpush1.bf16.msra.mxu0 %v896
    %913 = vmatprep.subr.bf16.mxu0 0
    %914 = vmatpush1.bf16.msra.mxu0 %v895
    %915 = vmatprep.subr.bf16.mxu0 0
    %916 = vmatpush2.bf16.msra.mxu0 0
    %917 = vmatprep.subr.bf16.mxu0 0
    %918 = vmatpush2.bf16.msra.mxu0 0
    %919 = vmatprep.subr.bf16.mxu0 0
    %920 = vmatpush2.bf16.msra.mxu0 0
    %921 = vmatprep.subr.bf16.mxu0 0
    %922 = vmatpush2.bf16.msra.mxu0 0
    %923 = vmatprep.subr.bf16.mxu0 0
    %924 = vmatpush2.bf16.msra.mxu0 0
    %925 = vmatprep.subr.bf16.mxu0 0
    %926 = vmatpush2.bf16.msra.mxu0 0
    %927 = vmatprep.subr.bf16.mxu0 0
    %928 = vmatpush2.bf16.msra.mxu0 0
    %929 = vmatprep.subr.bf16.mxu0 0
    %930 = vmatpush2.bf16.msra.mxu0 0
    %931 = vmatprep.mubr.bf16.mxu0 0
    %932 = vmatmul.mubr.bf16.gmra.mxu0 %v173
    %v933 = vpop.f32.mrf.mxu0
    %v934 = vadd.f32 0.0, %v933
    %v935 = vpop.f32.mrf.mxu0
    %v936 = vpop.f32.mrf.mxu0
    %v937 = vpop.f32.mrf.mxu0
    %938 = vdwg.mxu0
    %v939 = vadd.f32 %v857, %v934
    %v940 = vxor.u32 %v939, 2147483648
    %v941 = vmul.f32 %v940, 1.442695
    %v942 = vpow.pop %v941
    %v943 = vadd.f32 %v942, 1.0
    %v944 = vrcp.pop %v943
    %v945 = vmul.f32 1.0, %v944
    %v946 = vmul.f32 %v945, 2.0
    %v947 = vsub.f32 %v946, 1.0
    %v948 = vmul.f32 %v945, 0.0
    %950 = vrot.lane.b32.xlu0 %v947, 64
    %v951 = vpop.permute.xlu0 %950
    %v953 = vmul.f32 %v945, %v951
    %955 = vrot.lane.b32.xlu0 %v953, 32
    %v956 = vpop.permute.xlu0 %955
    %v958 = vadd.f32 %v948, %v956
    %v959 = vtanh.pop %v958
    %961 = vrot.lane.b32.xlu0 %v959, 64
    %v962 = vpop.permute.xlu0 %961
    %v964 = vmul.f32 %v945, %v962
    %v965 = vpack.c.bf16 %v964, %v964
    %967 = vrot.lane.b32.xlu0 %v965, 32
    %v968 = vpop.permute.xlu0 %967
    %v970 = vsel %vm171, %v968, 0
    %972 = vmatprep.subr.bf16.mxu0 0
    %973 = vmatpush1.bf16.msra.mxu0 0
    %974 = vmatprep.subr.bf16.mxu0 0
    %975 = vmatpush1.bf16.msra.mxu0 0
    %976 = vmatprep.subr.bf16.mxu0 0
    %977 = vmatpush1.bf16.msra.mxu0 0
    %978 = vmatprep.subr.bf16.mxu0 0
    %979 = vmatpush1.bf16.msra.mxu0 0
    %980 = vmatprep.subr.bf16.mxu0 0
    %981 = vmatpush1.bf16.msra.mxu0 0
    %982 = vmatprep.subr.bf16.mxu0 0
    %983 = vmatpush1.bf16.msra.mxu0 0
    %984 = vmatprep.subr.bf16.mxu0 0
    %985 = vmatpush1.bf16.msra.mxu0 %v896
    %986 = vmatprep.subr.bf16.mxu0 0
    %987 = vmatpush1.bf16.msra.mxu0 %v895
    %988 = vmatprep.subr.bf16.mxu0 0
    %989 = vmatpush2.bf16.msra.mxu0 0
    %990 = vmatprep.subr.bf16.mxu0 0
    %991 = vmatpush2.bf16.msra.mxu0 0
    %992 = vmatprep.subr.bf16.mxu0 0
    %993 = vmatpush2.bf16.msra.mxu0 0
    %994 = vmatprep.subr.bf16.mxu0 0
    %995 = vmatpush2.bf16.msra.mxu0 0
    %996 = vmatprep.subr.bf16.mxu0 0
    %997 = vmatpush2.bf16.msra.mxu0 0
    %998 = vmatprep.subr.bf16.mxu0 0
    %999 = vmatpush2.bf16.msra.mxu0 0
    %1000 = vmatprep.subr.bf16.mxu0 0
    %1001 = vmatpush2.bf16.msra.mxu0 0
    %1002 = vmatprep.subr.bf16.mxu0 0
    %1003 = vmatpush2.bf16.msra.mxu0 0
    %1004 = vmatprep.mubr.bf16.mxu0 0
    %1005 = vmatmul.mubr.bf16.gmra.mxu0 %v970
    %v1006 = vpop.f32.mrf.mxu0
    %v1007 = vadd.f32 0.0, %v1006
    %v1008 = vpop.f32.mrf.mxu0
    %v1009 = vpop.f32.mrf.mxu0
    %v1010 = vpop.f32.mrf.mxu0
    %1011 = vdwg.mxu0
    %v1012 = vadd.f32 %v860, %v1007
    %v1013 = vxor.u32 %v1012, 2147483648
    %v1014 = vmul.f32 %v1013, 1.442695
    %v1015 = vpow.pop %v1014
    %v1016 = vadd.f32 %v1015, 1.0
    %v1017 = vrcp.pop %v1016
    %v1018 = vmul.f32 1.0, %v1017
    %v1019 = vmul.f32 %v1018, 2.0
    %v1020 = vsub.f32 %v1019, 1.0
    %v1021 = vmul.f32 %v1018, %v958
    %1023 = vrot.lane.b32.xlu0 %v1020, 64
    %v1024 = vpop.permute.xlu0 %1023
    %v1026 = vmul.f32 %v1018, %v1024
    %1028 = vrot.lane.b32.xlu0 %v1026, 32
    %v1029 = vpop.permute.xlu0 %1028
    %v1031 = vadd.f32 %v1021, %v1029
    %v1032 = vtanh.pop %v1031
    %1034 = vrot.lane.b32.xlu0 %v1032, 64
    %v1035 = vpop.permute.xlu0 %1034
    %v1037 = vmul.f32 %v1018, %v1035
    %v1038 = vpack.c.bf16 %v1037, %v1037
    %1040 = vrot.lane.b32.xlu0 %v1038, 32
    %v1041 = vpop.permute.xlu0 %1040
    %v1043 = vsel %vm171, %v1041, 0
    %1045 = vmatprep.subr.bf16.mxu0 0
    %1046 = vmatpush1.bf16.msra.mxu0 0
    %1047 = vmatprep.subr.bf16.mxu0 0
    %1048 = vmatpush1.bf16.msra.mxu0 0
    %1049 = vmatprep.subr.bf16.mxu0 0
    %1050 = vmatpush1.bf16.msra.mxu0 0
    %1051 = vmatprep.subr.bf16.mxu0 0
    %1052 = vmatpush1.bf16.msra.mxu0 0
    %1053 = vmatprep.subr.bf16.mxu0 0
    %1054 = vmatpush1.bf16.msra.mxu0 0
    %1055 = vmatprep.subr.bf16.mxu0 0
    %1056 = vmatpush1.bf16.msra.mxu0 0
    %1057 = vmatprep.subr.bf16.mxu0 0
    %1058 = vmatpush1.bf16.msra.mxu0 %v896
    %1059 = vmatprep.subr.bf16.mxu0 0
    %1060 = vmatpush1.bf16.msra.mxu0 %v895
    %1061 = vmatprep.subr.bf16.mxu0 0
    %1062 = vmatpush2.bf16.msra.mxu0 0
    %1063 = vmatprep.subr.bf16.mxu0 0
    %1064 = vmatpush2.bf16.msra.mxu0 0
    %1065 = vmatprep.subr.bf16.mxu0 0
    %1066 = vmatpush2.bf16.msra.mxu0 0
    %1067 = vmatprep.subr.bf16.mxu0 0
    %1068 = vmatpush2.bf16.msra.mxu0 0
    %1069 = vmatprep.subr.bf16.mxu0 0
    %1070 = vmatpush2.bf16.msra.mxu0 0
    %1071 = vmatprep.subr.bf16.mxu0 0
    %1072 = vmatpush2.bf16.msra.mxu0 0
    %1073 = vmatprep.subr.bf16.mxu0 0
    %1074 = vmatpush2.bf16.msra.mxu0 0
    %1075 = vmatprep.subr.bf16.mxu0 0
    %1076 = vmatpush2.bf16.msra.mxu0 0
    %1077 = vmatprep.mubr.bf16.mxu0 0
    %1078 = vmatmul.mubr.bf16.gmra.mxu0 %v1043
    %v1079 = vpop.f32.mrf.mxu0
    %v1080 = vadd.f32 0.0, %v1079
    %v1081 = vpop.f32.mrf.mxu0
    %v1082 = vpop.f32.mrf.mxu0
    %v1083 = vpop.f32.mrf.mxu0
    %1084 = vdwg.mxu0
    %v1085 = vadd.f32 %v865, %v1080
    %v1086 = vxor.u32 %v1085, 2147483648
    %v1087 = vmul.f32 %v1086, 1.442695
    %v1088 = vpow.pop %v1087
    %v1089 = vadd.f32 %v1088, 1.0
    %v1090 = vrcp.pop %v1089
    %v1091 = vmul.f32 1.0, %v1090
    %v1092 = vmul.f32 %v1091, 2.0
    %v1093 = vsub.f32 %v1092, 1.0
    %v1094 = vmul.f32 %v1091, %v1031
    %1096 = vrot.lane.b32.xlu0 %v1093, 64
    %v1097 = vpop.permute.xlu0 %1096
    %v1099 = vmul.f32 %v1091, %v1097
    %1101 = vrot.lane.b32.xlu0 %v1099, 32
    %v1102 = vpop.permute.xlu0 %1101
    %v1104 = vadd.f32 %v1094, %v1102
    %v1105 = vtanh.pop %v1104
    %1107 = vrot.lane.b32.xlu0 %v1105, 64
    %v1108 = vpop.permute.xlu0 %1107
    %v1110 = vmul.f32 %v1091, %v1108
    %v1111 = vpack.c.bf16 %v1110, %v1110
    %1113 = vrot.lane.b32.xlu0 %v1111, 32
    %v1114 = vpop.permute.xlu0 %1113
    %v1116 = vsel %vm171, %v1114, 0
    %1118 = vmatprep.subr.bf16.mxu0 0
    %1119 = vmatpush1.bf16.msra.mxu0 0
    %1120 = vmatprep.subr.bf16.mxu0 0
    %1121 = vmatpush1.bf16.msra.mxu0 0
    %1122 = vmatprep.subr.bf16.mxu0 0
    %1123 = vmatpush1.bf16.msra.mxu0 0
    %1124 = vmatprep.subr.bf16.mxu0 0
    %1125 = vmatpush1.bf16.msra.mxu0 0
    %1126 = vmatprep.subr.bf16.mxu0 0
    %1127 = vmatpush1.bf16.msra.mxu0 0
    %1128 = vmatprep.subr.bf16.mxu0 0
    %1129 = vmatpush1.bf16.msra.mxu0 0
    %1130 = vmatprep.subr.bf16.mxu0 0
    %1131 = vmatpush1.bf16.msra.mxu0 %v896
    %1132 = vmatprep.subr.bf16.mxu0 0
    %1133 = vmatpush1.bf16.msra.mxu0 %v895
    %1134 = vmatprep.subr.bf16.mxu0 0
    %1135 = vmatpush2.bf16.msra.mxu0 0
    %1136 = vmatprep.subr.bf16.mxu0 0
    %1137 = vmatpush2.bf16.msra.mxu0 0
    %1138 = vmatprep.subr.bf16.mxu0 0
    %1139 = vmatpush2.bf16.msra.mxu0 0
    %1140 = vmatprep.subr.bf16.mxu0 0
    %1141 = vmatpush2.bf16.msra.mxu0 0
    %1142 = vmatprep.subr.bf16.mxu0 0
    %1143 = vmatpush2.bf16.msra.mxu0 0
    %1144 = vmatprep.subr.bf16.mxu0 0
    %1145 = vmatpush2.bf16.msra.mxu0 0
    %1146 = vmatprep.subr.bf16.mxu0 0
    %1147 = vmatpush2.bf16.msra.mxu0 0
    %1148 = vmatprep.subr.bf16.mxu0 0
    %1149 = vmatpush2.bf16.msra.mxu0 0
    %1150 = vmatprep.mubr.bf16.mxu0 0
    %1151 = vmatmul.mubr.bf16.gmra.mxu0 %v1116
    %v1152 = vpop.f32.mrf.mxu0
    %v1153 = vadd.f32 0.0, %v1152
    %v1154 = vpop.f32.mrf.mxu0
    %v1155 = vpop.f32.mrf.mxu0
    %v1156 = vpop.f32.mrf.mxu0
    %1157 = vdwg.mxu0
    %v1158 = vadd.f32 %v868, %v1153
    %v1159 = vxor.u32 %v1158, 2147483648
    %v1160 = vmul.f32 %v1159, 1.442695
    %v1161 = vpow.pop %v1160
    %v1162 = vadd.f32 %v1161, 1.0
    %v1163 = vrcp.pop %v1162
    %v1164 = vmul.f32 1.0, %v1163
    %v1165 = vmul.f32 %v1164, 2.0
    %v1166 = vsub.f32 %v1165, 1.0
    %v1167 = vmul.f32 %v1164, %v1104
    %1169 = vrot.lane.b32.xlu0 %v1166, 64
    %v1170 = vpop.permute.xlu0 %1169
    %v1172 = vmul.f32 %v1164, %v1170
    %1174 = vrot.lane.b32.xlu0 %v1172, 32
    %v1175 = vpop.permute.xlu0 %1174
    %v1177 = vadd.f32 %v1167, %v1175
    %v1178 = vtanh.pop %v1177
    %1180 = vrot.lane.b32.xlu0 %v1178, 64
    %v1181 = vpop.permute.xlu0 %1180
    %v1183 = vmul.f32 %v1164, %v1181
    %v1184 = vpack.c.bf16 %v1183, %v1183
    %1186 = vrot.lane.b32.xlu0 %v1184, 32
    %v1187 = vpop.permute.xlu0 %1186
    %v1189 = vsel %vm171, %v1187, 0
    %1191 = vmatprep.subr.bf16.mxu0 0
    %1192 = vmatpush1.bf16.msra.mxu0 0
    %1193 = vmatprep.subr.bf16.mxu0 0
    %1194 = vmatpush1.bf16.msra.mxu0 0
    %1195 = vmatprep.subr.bf16.mxu0 0
    %1196 = vmatpush1.bf16.msra.mxu0 0
    %1197 = vmatprep.subr.bf16.mxu0 0
    %1198 = vmatpush1.bf16.msra.mxu0 0
    %1199 = vmatprep.subr.bf16.mxu0 0
    %1200 = vmatpush1.bf16.msra.mxu0 0
    %1201 = vmatprep.subr.bf16.mxu0 0
    %1202 = vmatpush1.bf16.msra.mxu0 0
    %1203 = vmatprep.subr.bf16.mxu0 0
    %1204 = vmatpush1.bf16.msra.mxu0 %v896
    %1205 = vmatprep.subr.bf16.mxu0 0
    %1206 = vmatpush1.bf16.msra.mxu0 %v895
    %1207 = vmatprep.subr.bf16.mxu0 0
    %1208 = vmatpush2.bf16.msra.mxu0 0
    %1209 = vmatprep.subr.bf16.mxu0 0
    %1210 = vmatpush2.bf16.msra.mxu0 0
    %1211 = vmatprep.subr.bf16.mxu0 0
    %1212 = vmatpush2.bf16.msra.mxu0 0
    %1213 = vmatprep.subr.bf16.mxu0 0
    %1214 = vmatpush2.bf16.msra.mxu0 0
    %1215 = vmatprep.subr.bf16.mxu0 0
    %1216 = vmatpush2.bf16.msra.mxu0 0
    %1217 = vmatprep.subr.bf16.mxu0 0
    %1218 = vmatpush2.bf16.msra.mxu0 0
    %1219 = vmatprep.subr.bf16.mxu0 0
    %1220 = vmatpush2.bf16.msra.mxu0 0
    %1221 = vmatprep.subr.bf16.mxu0 0
    %1222 = vmatpush2.bf16.msra.mxu0 0
    %1223 = vmatprep.mubr.bf16.mxu0 0
    %1224 = vmatmul.mubr.bf16.gmra.mxu0 %v1189
    %v1225 = vpop.f32.mrf.mxu0
    %v1226 = vadd.f32 0.0, %v1225
    %v1227 = vpop.f32.mrf.mxu0
    %v1228 = vpop.f32.mrf.mxu0
    %v1229 = vpop.f32.mrf.mxu0
    %1230 = vdwg.mxu0
    %v1231 = vadd.f32 %v873, %v1226
    %v1232 = vxor.u32 %v1231, 2147483648
    %v1233 = vmul.f32 %v1232, 1.442695
    %v1234 = vpow.pop %v1233
    %v1235 = vadd.f32 %v1234, 1.0
    %v1236 = vrcp.pop %v1235
    %v1237 = vmul.f32 1.0, %v1236
    %v1238 = vmul.f32 %v1237, 2.0
    %v1239 = vsub.f32 %v1238, 1.0
    %v1240 = vmul.f32 %v1237, %v1177
    %1242 = vrot.lane.b32.xlu0 %v1239, 64
    %v1243 = vpop.permute.xlu0 %1242
    %v1245 = vmul.f32 %v1237, %v1243
    %1247 = vrot.lane.b32.xlu0 %v1245, 32
    %v1248 = vpop.permute.xlu0 %1247
    %v1250 = vadd.f32 %v1240, %v1248
    %v1251 = vtanh.pop %v1250
    %1253 = vrot.lane.b32.xlu0 %v1251, 64
    %v1254 = vpop.permute.xlu0 %1253
    %v1256 = vmul.f32 %v1237, %v1254
    %v1257 = vpack.c.bf16 %v1256, %v1256
    %1259 = vrot.lane.b32.xlu0 %v1257, 32
    %v1260 = vpop.permute.xlu0 %1259
    %v1262 = vsel %vm171, %v1260, 0
    %1264 = vmatprep.subr.bf16.mxu0 0
    %1265 = vmatpush1.bf16.msra.mxu0 0
    %1266 = vmatprep.subr.bf16.mxu0 0
    %1267 = vmatpush1.bf16.msra.mxu0 0
    %1268 = vmatprep.subr.bf16.mxu0 0
    %1269 = vmatpush1.bf16.msra.mxu0 0
    %1270 = vmatprep.subr.bf16.mxu0 0
    %1271 = vmatpush1.bf16.msra.mxu0 0
    %1272 = vmatprep.subr.bf16.mxu0 0
    %1273 = vmatpush1.bf16.msra.mxu0 0
    %1274 = vmatprep.subr.bf16.mxu0 0
    %1275 = vmatpush1.bf16.msra.mxu0 0
    %1276 = vmatprep.subr.bf16.mxu0 0
    %1277 = vmatpush1.bf16.msra.mxu0 %v896
    %1278 = vmatprep.subr.bf16.mxu0 0
    %1279 = vmatpush1.bf16.msra.mxu0 %v895
    %1280 = vmatprep.subr.bf16.mxu0 0
    %1281 = vmatpush2.bf16.msra.mxu0 0
    %1282 = vmatprep.subr.bf16.mxu0 0
    %1283 = vmatpush2.bf16.msra.mxu0 0
    %1284 = vmatprep.subr.bf16.mxu0 0
    %1285 = vmatpush2.bf16.msra.mxu0 0
    %1286 = vmatprep.subr.bf16.mxu0 0
    %1287 = vmatpush2.bf16.msra.mxu0 0
    %1288 = vmatprep.subr.bf16.mxu0 0
    %1289 = vmatpush2.bf16.msra.mxu0 0
    %1290 = vmatprep.subr.bf16.mxu0 0
    %1291 = vmatpush2.bf16.msra.mxu0 0
    %1292 = vmatprep.subr.bf16.mxu0 0
    %1293 = vmatpush2.bf16.msra.mxu0 0
    %1294 = vmatprep.subr.bf16.mxu0 0
    %1295 = vmatpush2.bf16.msra.mxu0 0
    %1296 = vmatprep.mubr.bf16.mxu0 0
    %1297 = vmatmul.mubr.bf16.gmra.mxu0 %v1262
    %v1298 = vpop.f32.mrf.mxu0
    %v1299 = vadd.f32 0.0, %v1298
    %v1300 = vpop.f32.mrf.mxu0
    %v1301 = vpop.f32.mrf.mxu0
    %v1302 = vpop.f32.mrf.mxu0
    %1303 = vdwg.mxu0
    %v1304 = vadd.f32 %v876, %v1299
    %v1305 = vxor.u32 %v1304, 2147483648
    %v1306 = vmul.f32 %v1305, 1.442695
    %v1307 = vpow.pop %v1306
    %v1308 = vadd.f32 %v1307, 1.0
    %v1309 = vrcp.pop %v1308
    %v1310 = vmul.f32 1.0, %v1309
    %v1311 = vmul.f32 %v1310, 2.0
    %v1312 = vsub.f32 %v1311, 1.0
    %v1313 = vmul.f32 %v1310, %v1250
    %1315 = vrot.lane.b32.xlu0 %v1312, 64
    %v1316 = vpop.permute.xlu0 %1315
    %v1318 = vmul.f32 %v1310, %v1316
    %1320 = vrot.lane.b32.xlu0 %v1318, 32
    %v1321 = vpop.permute.xlu0 %1320
    %v1323 = vadd.f32 %v1313, %v1321
    %v1324 = vtanh.pop %v1323
    %1326 = vrot.lane.b32.xlu0 %v1324, 64
    %v1327 = vpop.permute.xlu0 %1326
    %v1329 = vmul.f32 %v1310, %v1327
    %v1330 = vpack.c.bf16 %v1329, %v1329
    %1332 = vrot.lane.b32.xlu0 %v1330, 32
    %v1333 = vpop.permute.xlu0 %1332
    %v1335 = vsel %vm171, %v1333, 0
    %1337 = vmatprep.subr.bf16.mxu0 0
    %1338 = vmatpush1.bf16.msra.mxu0 0
    %1339 = vmatprep.subr.bf16.mxu0 0
    %1340 = vmatpush1.bf16.msra.mxu0 0
    %1341 = vmatprep.subr.bf16.mxu0 0
    %1342 = vmatpush1.bf16.msra.mxu0 0
    %1343 = vmatprep.subr.bf16.mxu0 0
    %1344 = vmatpush1.bf16.msra.mxu0 0
    %1345 = vmatprep.subr.bf16.mxu0 0
    %1346 = vmatpush1.bf16.msra.mxu0 0
    %1347 = vmatprep.subr.bf16.mxu0 0
    %1348 = vmatpush1.bf16.msra.mxu0 0
    %1349 = vmatprep.subr.bf16.mxu0 0
    %1350 = vmatpush1.bf16.msra.mxu0 %v896
    %1351 = vmatprep.subr.bf16.mxu0 0
    %1352 = vmatpush1.bf16.msra.mxu0 %v895
    %1353 = vmatprep.subr.bf16.mxu0 0
    %1354 = vmatpush2.bf16.msra.mxu0 0
    %1355 = vmatprep.subr.bf16.mxu0 0
    %1356 = vmatpush2.bf16.msra.mxu0 0
    %1357 = vmatprep.subr.bf16.mxu0 0
    %1358 = vmatpush2.bf16.msra.mxu0 0
    %1359 = vmatprep.subr.bf16.mxu0 0
    %1360 = vmatpush2.bf16.msra.mxu0 0
    %1361 = vmatprep.subr.bf16.mxu0 0
    %1362 = vmatpush2.bf16.msra.mxu0 0
    %1363 = vmatprep.subr.bf16.mxu0 0
    %1364 = vmatpush2.bf16.msra.mxu0 0
    %1365 = vmatprep.subr.bf16.mxu0 0
    %1366 = vmatpush2.bf16.msra.mxu0 0
    %1367 = vmatprep.subr.bf16.mxu0 0
    %1368 = vmatpush2.bf16.msra.mxu0 0
    %1369 = vmatprep.mubr.bf16.mxu0 0
    %1370 = vmatmul.mubr.bf16.gmra.mxu0 %v1335
    %v1371 = vpop.f32.mrf.mxu0
    %v1372 = vadd.f32 0.0, %v1371
    %v1373 = vpop.f32.mrf.mxu0
    %v1374 = vpop.f32.mrf.mxu0
    %v1375 = vpop.f32.mrf.mxu0
    %1376 = vdwg.mxu0
    %v1377 = vadd.f32 %v881, %v1372
    %v1378 = vxor.u32 %v1377, 2147483648
    %v1379 = vmul.f32 %v1378, 1.442695
    %v1380 = vpow.pop %v1379
    %v1381 = vadd.f32 %v1380, 1.0
    %v1382 = vrcp.pop %v1381
    %v1383 = vmul.f32 1.0, %v1382
    %v1384 = vmul.f32 %v1383, 2.0
    %v1385 = vsub.f32 %v1384, 1.0
    %v1386 = vmul.f32 %v1383, %v1323
    %1388 = vrot.lane.b32.xlu0 %v1385, 64
    %v1389 = vpop.permute.xlu0 %1388
    %v1391 = vmul.f32 %v1383, %v1389
    %1393 = vrot.lane.b32.xlu0 %v1391, 32
    %v1394 = vpop.permute.xlu0 %1393
    %v1396 = vadd.f32 %v1386, %v1394
    %v1397 = vtanh.pop %v1396
    %1399 = vrot.lane.b32.xlu0 %v1397, 64
    %v1400 = vpop.permute.xlu0 %1399
    %v1402 = vmul.f32 %v1383, %v1400
    %v1403 = vpack.c.bf16 %v1402, %v1402
    %1405 = vrot.lane.b32.xlu0 %v1403, 32
    %v1406 = vpop.permute.xlu0 %1405
    %v1408 = vsel %vm171, %v1406, 0
    %1410 = vmatprep.subr.bf16.mxu0 0
    %1411 = vmatpush1.bf16.msra.mxu0 0
    %1412 = vmatprep.subr.bf16.mxu0 0
    %1413 = vmatpush1.bf16.msra.mxu0 0
    %1414 = vmatprep.subr.bf16.mxu0 0
    %1415 = vmatpush1.bf16.msra.mxu0 0
    %1416 = vmatprep.subr.bf16.mxu0 0
    %1417 = vmatpush1.bf16.msra.mxu0 0
    %1418 = vmatprep.subr.bf16.mxu0 0
    %1419 = vmatpush1.bf16.msra.mxu0 0
    %1420 = vmatprep.subr.bf16.mxu0 0
    %1421 = vmatpush1.bf16.msra.mxu0 0
    %1422 = vmatprep.subr.bf16.mxu0 0
    %1423 = vmatpush1.bf16.msra.mxu0 %v896
    %1424 = vmatprep.subr.bf16.mxu0 0
    %1425 = vmatpush1.bf16.msra.mxu0 %v895
    %1426 = vmatprep.subr.bf16.mxu0 0
    %1427 = vmatpush2.bf16.msra.mxu0 0
    %1428 = vmatprep.subr.bf16.mxu0 0
    %1429 = vmatpush2.bf16.msra.mxu0 0
    %1430 = vmatprep.subr.bf16.mxu0 0
    %1431 = vmatpush2.bf16.msra.mxu0 0
    %1432 = vmatprep.subr.bf16.mxu0 0
    %1433 = vmatpush2.bf16.msra.mxu0 0
    %1434 = vmatprep.subr.bf16.mxu0 0
    %1435 = vmatpush2.bf16.msra.mxu0 0
    %1436 = vmatprep.subr.bf16.mxu0 0
    %1437 = vmatpush2.bf16.msra.mxu0 0
    %1438 = vmatprep.subr.bf16.mxu0 0
    %1439 = vmatpush2.bf16.msra.mxu0 0
    %1440 = vmatprep.subr.bf16.mxu0 0
    %1441 = vmatpush2.bf16.msra.mxu0 0
    %1442 = vmatprep.mubr.bf16.mxu0 0
    %1443 = vmatmul.mubr.bf16.gmra.mxu0 %v1408
    %v1444 = vpop.f32.mrf.mxu0
    %v1445 = vadd.f32 0.0, %v1444
    %v1446 = vpop.f32.mrf.mxu0
    %v1447 = vpop.f32.mrf.mxu0
    %v1448 = vpop.f32.mrf.mxu0
    %1449 = vdwg.mxu0
    %v1450 = vadd.f32 %v884, %v1445
    %v1451 = vxor.u32 %v1450, 2147483648
    %v1452 = vmul.f32 %v1451, 1.442695
    %v1453 = vpow.pop %v1452
    %v1454 = vadd.f32 %v1453, 1.0
    %v1455 = vrcp.pop %v1454
    %v1456 = vmul.f32 1.0, %v1455
    %v1457 = vmul.f32 %v1456, 2.0
    %v1458 = vsub.f32 %v1457, 1.0
    %v1459 = vmul.f32 %v1456, %v1396
    %1461 = vrot.lane.b32.xlu0 %v1458, 64
    %v1462 = vpop.permute.xlu0 %1461
    %v1464 = vmul.f32 %v1456, %v1462
    %1466 = vrot.lane.b32.xlu0 %v1464, 32
    %v1467 = vpop.permute.xlu0 %1466
    %v1469 = vadd.f32 %v1459, %v1467
    %v1470 = vtanh.pop %v1469
    %1472 = vrot.lane.b32.xlu0 %v1470, 64
    %v1473 = vpop.permute.xlu0 %1472
    %v1475 = vmul.f32 %v1456, %v1473
    %v1476 = vpack.c.bf16 %v1475, %v1475
    %v1477 = vld [vmem:[%s7] sm:$0xf]
    %v1478 = vld [vmem:[%s7 + $0x4] sm:$0xf]
    %v1479 = vld [vmem:[%s7 + $0x8] sm:$0xf]
    %v1480 = vld [vmem:[%s7 + $0xc] sm:$0xf]
    %v1481 = vld [vmem:[%s8] sm:$0x1]
    %v1483 = vlaneseq
    %v1484 = vshrl.u32 %v1483, 7
    %v1485 = vsub.s32 0, %v1484
    %v1486 = vrot.slane %v1481, %v1485
    %1489 = vrot.lane.b32.xlu0 %v1476, 32
    %v1490 = vpop.permute.xlu0 %1489
    %v1495 = vunpack.c.l.b16 %v1477
    %v1496 = vunpack.c.l.b16 %v1478
    %v1497 = vunpack.c.l.b16 %v1479
    %v1498 = vunpack.c.l.b16 %v1480
    %v1499 = vpack.c.b16 %v1496, %v1495
    %v1500 = vpack.c.b16 %v1498, %v1497
    %v1504 = vsel %vm171, %v1490, 0
    %1506 = vmatprep.subr.bf16.mxu0 0
    %1507 = vmatpush1.bf16.msra.mxu0 0
    %1508 = vmatprep.subr.bf16.mxu0 0
    %1509 = vmatpush1.bf16.msra.mxu0 0
    %1510 = vmatprep.subr.bf16.mxu0 0
    %1511 = vmatpush1.bf16.msra.mxu0 0
    %1512 = vmatprep.subr.bf16.mxu0 0
    %1513 = vmatpush1.bf16.msra.mxu0 0
    %1514 = vmatprep.subr.bf16.mxu0 0
    %1515 = vmatpush1.bf16.msra.mxu0 0
    %1516 = vmatprep.subr.bf16.mxu0 0
    %1517 = vmatpush1.bf16.msra.mxu0 0
    %1518 = vmatprep.subr.bf16.mxu0 0
    %1519 = vmatpush1.bf16.msra.mxu0 %v1500
    %1520 = vmatprep.subr.bf16.mxu0 0
    %1521 = vmatpush1.bf16.msra.mxu0 %v1499
    %1522 = vmatprep.subr.bf16.mxu0 0
    %1523 = vmatpush2.bf16.msra.mxu0 0
    %1524 = vmatprep.subr.bf16.mxu0 0
    %1525 = vmatpush2.bf16.msra.mxu0 0
    %1526 = vmatprep.subr.bf16.mxu0 0
    %1527 = vmatpush2.bf16.msra.mxu0 0
    %1528 = vmatprep.subr.bf16.mxu0 0
    %1529 = vmatpush2.bf16.msra.mxu0 0
    %1530 = vmatprep.subr.bf16.mxu0 0
    %1531 = vmatpush2.bf16.msra.mxu0 0
    %1532 = vmatprep.subr.bf16.mxu0 0
    %1533 = vmatpush2.bf16.msra.mxu0 0
    %1534 = vmatprep.subr.bf16.mxu0 0
    %1535 = vmatpush2.bf16.msra.mxu0 0
    %1536 = vmatprep.subr.bf16.mxu0 0
    %1537 = vmatpush2.bf16.msra.mxu0 0
    %1538 = vmatprep.mubr.bf16.mxu0 0
    %1539 = vmatmul.mubr.bf16.gmra.mxu0 %v1504
    %v1540 = vpop.f32.mrf.mxu0
    %v1541 = vadd.f32 %v1486, %v1540
    %v1542 = vpop.f32.mrf.mxu0
    %v1543 = vpop.f32.mrf.mxu0
    %v1544 = vpop.f32.mrf.mxu0
    %1545 = vdwg.mxu0
    %1546 = vst.msk [vmem:[#allocation2] sm:$0xff] %vm81, %v1541
    // Predicated region
    $region38: #{tpu_custom_call.1} parent=1 // pred_check
      _
    $region39: #{tpu_custom_call.1} parent=1 // pred_check_branch
      %1548 = sbr.rel (0) target = $region41
    $region40: #{tpu_custom_call.1} parent=1 // pred_region
      %s1550 = ssub.s32 128, 128
      %1551 = vsyncadd [#allocation3], %s1550
      %s1553 = sshll.u32 [#allocation2], 4
      %s1554 = int_to_ptr.vmem [resolvable:$true] %s1553
      %1556 = dma.vmem_to_hbm [thread:$0]  %s1554, 128, %s9, [#allocation3]
    $region41: #{tpu_custom_call.1} parent=1 // pred_fallthru
      _
    // Predicated region
    $region42: #{tpu_custom_call.1} parent=1 // pred_check
      _
    $region43: #{tpu_custom_call.1} parent=1 // pred_check_branch
      %1558 = sbr.rel (0) target = $region45
    $region44: #{tpu_custom_call.1} parent=1 // pred_region
      %1559 = dma.done [#allocation3], 128
    $region45: #{tpu_custom_call.1} parent=1 // pred_fallthru
      _
    %1560 = vsyncpa [#allocation3], 1

</llo_original>
